<compile_context>
chip_gen: v6e
topology: v6e:2x2x1
jax: 0.10.0
libtpu: 0.0.40
codegen_flags: <defaults>
</compile_context>

<pallas_src>
import functools

import jax
import jax.numpy as jnp
from jax import lax
from jax.experimental import pallas as pl
from jax.experimental.pallas import tpu as pltpu

ACT_DTYPE = jnp.bfloat16            # MXU-friendly inputs on v5e/v6e/v7x


def _vmem_limit_bytes():
    """~75% of physical VMEM, capped at 100 MiB (v5e/v6e -> ~96 MiB, v7x -> 48 MiB)."""
    phys = 64 * 1024 * 1024
    try:
        info = pltpu.get_tpu_info()
        if getattr(info, "vmem_capacity_bytes", 0):
            phys = int(info.vmem_capacity_bytes)
    except Exception:
        pass
    return min(phys * 3 // 4, 100 * 1024 * 1024)


VMEM_LIMIT = _vmem_limit_bytes()

_ROW_PREFS = (1024, 512, 256, 128, 64, 32, 16, 8)
_COL_PREFS = (512, 256, 128)
_K_PREFS = (1024, 512, 256)
_TQ_PREFS = (256, 128, 64, 32, 16, 8)


def _pick(dim, prefs):
    """Largest preferred tile evenly dividing `dim` (falls back to the full dim)."""
    for p in prefs:
        if p <= dim and dim % p == 0:
            return p
    return dim


# ----------------------------------------------------------------------------
# Kernel bodies
# ----------------------------------------------------------------------------
def _ln_mm_kernel(x_ref, g_ref, bln_ref, w_ref, b_ref, o_ref, xn_ref, *, eps, activation):
    """Fused LayerNorm + matmul + bias (+ReLU).  LN of the (tm, H) row block is computed
    once per row block (grid axis 1 is innermost/"arbitrary") and cached in xn_ref."""

    @pl.when(pl.program_id(1) == 0)
    def _():
        x = x_ref[...].astype(jnp.float32)
        mu = jnp.mean(x, axis=-1, keepdims=True)
        var = jnp.mean(jnp.square(x - mu), axis=-1, keepdims=True)
        xn = (x - mu) * lax.rsqrt(var + eps)
        xn_ref[...] = (xn * g_ref[...] + bln_ref[...]).astype(xn_ref.dtype)

    y = jnp.dot(xn_ref[...], w_ref[...], preferred_element_type=jnp.float32)
    y = y + b_ref[...].astype(jnp.float32)
    if activation == "relu":
        y = jnp.maximum(y, 0.0)
    o_ref[...] = y.astype(o_ref.dtype)


def _mm_res_kernel(x_ref, w_ref, b_ref, res_ref, o_ref, acc_ref):
    """K-tiled matmul with f32 accumulator; bias + residual fused at the last K step."""
    k = pl.program_id(2)

    @pl.when(k == 0)
    def _():
        acc_ref[...] = jnp.zeros_like(acc_ref)

    acc_ref[...] += jnp.dot(x_ref[...], w_ref[...], preferred_element_type=jnp.float32)

    @pl.when(k == pl.num_programs(2) - 1)
    def _():
        o_ref[...] = (acc_ref[...] + b_ref[...].astype(jnp.float32)
                      + res_ref[...].astype(jnp.float32)).astype(o_ref.dtype)


def _flash_kernel(q_ref, k_ref, v_ref, o_ref, *, tq, tkv, scale):
    """Flash-style causal attention.  Whole-S K/V slabs for the current head are resident
    in VMEM; the kv loop is in-kernel with trip count qi (only blocks at/below the diagonal
    are ever touched) and the causal mask is applied only on the diagonal block."""
    qi = pl.program_id(1)
    q = q_ref[...]                                   # (tq, hd) bf16
    hd = q_ref.shape[-1]

    def kv_block(step, carry, *, masked):
        m, l, acc = carry
        start = pl.multiple_of(step * tkv, tkv)
        k = k_ref[pl.ds(start, tkv), :]              # (tkv, hd) from the resident slab
        v = v_ref[pl.ds(start, tkv), :]
        s = lax.dot_general(q, k, (((1,), (1,)), ((), ())),
                            preferred_element_type=jnp.float32) * scale
        if masked:                                   # only the diagonal block needs this
            r = lax.broadcasted_iota(jnp.int32, (tq, tkv), 0)
            c = lax.broadcasted_iota(jnp.int32, (tq, tkv), 1)
            s = jnp.where(r >= c, s, -1e30)
        m_new = jnp.maximum(m, jnp.max(s, axis=-1, keepdims=True))
        alpha = jnp.exp(m - m_new)
        p = jnp.exp(s - m_new)
        l_new = alpha * l + jnp.sum(p, axis=-1, keepdims=True)
        acc_new = alpha * acc + jnp.dot(p.astype(v.dtype), v,
                                        preferred_element_type=jnp.float32)
        return m_new, l_new, acc_new

    carry = (jnp.full((tq, 1), -jnp.inf, jnp.float32),   # running max
             jnp.zeros((tq, 1), jnp.float32),            # running denom
             jnp.zeros((tq, hd), jnp.float32))           # running output
    # strictly-below-diagonal kv blocks: no mask, dynamic trip count == qi
    carry = lax.fori_loop(0, qi, functools.partial(kv_block, masked=False), carry)
    # diagonal block (the only partially-masked one)
    _, l, acc = kv_block(qi, carry, masked=True)
    o_ref[...] = (acc * pl.reciprocal(l, approx=True)).astype(o_ref.dtype)


# ----------------------------------------------------------------------------
# pallas_call wrappers
# ----------------------------------------------------------------------------
def ln_matmul(x, gamma, beta, w, b, *, activation="none", eps=1e-5):
    """(LN(x)) @ w + b, optionally ReLU.  x:(M,H) w:(H,N) -> (M,N) bf16, lane-dense."""
    M, H = x.shape
    _, N = w.shape
    tm = _pick(M, _ROW_PREFS)
    tn = _pick(N, _COL_PREFS)
    grid = (M // tm, N // tn)
    return pl.pallas_call(
        functools.partial(_ln_mm_kernel, eps=eps, activation=activation),
        out_shape=jax.ShapeDtypeStruct((M, N), ACT_DTYPE),
        grid_spec=pltpu.PrefetchScalarGridSpec(
            num_scalar_prefetch=0, grid=grid,
            in_specs=[
                pl.BlockSpec((tm, H), lambda r, n: (r, 0)),
                pl.BlockSpec((1, H), lambda r, n: (0, 0)),
                pl.BlockSpec((1, H), lambda r, n: (0, 0)),
                pl.BlockSpec((H, tn), lambda r, n: (0, n)),
                pl.BlockSpec((1, tn), lambda r, n: (0, n)),
            ],
            out_specs=pl.BlockSpec((tm, tn), lambda r, n: (r, n)),
            scratch_shapes=[pltpu.VMEM((tm, H), ACT_DTYPE)],
        ),
        compiler_params=pltpu.CompilerParams(
            dimension_semantics=("parallel", "arbitrary"),
            vmem_limit_bytes=VMEM_LIMIT),
    )(x, gamma.reshape(1, H), beta.reshape(1, H), w, b.reshape(1, N))


def flash_causal_attention(qkv, *, BH, S, hd, scale):
    """qkv:(3, BH, S, hd) bf16 -> (BH, S, hd) bf16 causal attention.

    Grid (BH, S//tq); K/V index maps depend only on the head axis, so the full-sequence
    slabs are DMA'd once per head and reused for every q block of that head."""
    tq = _pick(S, _TQ_PREFS)
    tkv = tq
    grid = (BH, S // tq)
    return pl.pallas_call(
        functools.partial(_flash_kernel, tq=tq, tkv=tkv, scale=scale),
        out_shape=jax.ShapeDtypeStruct((BH, S, hd), ACT_DTYPE),
        grid_spec=pltpu.PrefetchScalarGridSpec(
            num_scalar_prefetch=0, grid=grid,
            in_specs=[
                pl.BlockSpec((None, None, tq, hd), lambda bh, qi: (0, bh, qi, 0)),
                pl.BlockSpec((None, None, S, hd), lambda bh, qi: (1, bh, 0, 0)),
                pl.BlockSpec((None, None, S, hd), lambda bh, qi: (2, bh, 0, 0)),
            ],
            out_specs=pl.BlockSpec((None, tq, hd), lambda bh, qi: (bh, qi, 0)),
        ),
        compiler_params=pltpu.CompilerParams(
            dimension_semantics=("parallel", "arbitrary"),
            vmem_limit_bytes=VMEM_LIMIT),
    )(qkv, qkv, qkv)


def matmul_bias_residual(x, w, b, residual):
    """x @ w + b + residual with K-tiled accumulation.  x:(M,K) w:(K,N) -> (M,N) bf16."""
    M, K = x.shape
    _, N = w.shape
    tm = _pick(M, _ROW_PREFS)
    tn = _pick(N, _COL_PREFS)
    tk = _pick(K, _K_PREFS)
    grid = (M // tm, N // tn, K // tk)
    return pl.pallas_call(
        _mm_res_kernel,
        out_shape=jax.ShapeDtypeStruct((M, N), ACT_DTYPE),
        grid_spec=pltpu.PrefetchScalarGridSpec(
            num_scalar_prefetch=0, grid=grid,
            in_specs=[
                pl.BlockSpec((tm, tk), lambda r, n, k: (r, k)),
                pl.BlockSpec((tk, tn), lambda r, n, k: (k, n)),
                pl.BlockSpec((1, tn), lambda r, n, k: (0, n)),
                pl.BlockSpec((tm, tn), lambda r, n, k: (r, n)),
            ],
            out_specs=pl.BlockSpec((tm, tn), lambda r, n, k: (r, n)),
            scratch_shapes=[pltpu.VMEM((tm, tn), jnp.float32)],
        ),
        compiler_params=pltpu.CompilerParams(
            dimension_semantics=("parallel", "parallel", "arbitrary"),
            vmem_limit_bytes=VMEM_LIMIT),
    )(x, w, b.reshape(1, N), residual)


# ----------------------------------------------------------------------------
# Parameters (synthetic, deterministic) and forward pass
# ----------------------------------------------------------------------------
def init_params(key, cfg):
    H, F, L, r = cfg["hidden"], cfg["ffn"], cfg["layers"], cfg["lora_r"]
    std = 0.02
    keys = jax.random.split(key, 4 + L)

    def nrm(k, shape):
        return jax.random.normal(k, shape, jnp.float32) * std

    params = {
        # OPTLearnedPositionalEmbedding uses an offset of 2.
        "pos_emb": nrm(keys[0], (cfg["max_pos"] + 2, H)),
        "lnf_g": jnp.ones((H,), jnp.float32),
        "lnf_b": jnp.zeros((H,), jnp.float32),
        "head_w": nrm(keys[1], (H, 3)),
        "head_b": nrm(keys[2], (3,)),
        "layers": [],
    }
    lora_scale = cfg["lora_alpha"] / r
    for li in range(L):
        lk = jax.random.split(keys[4 + li], 16)
        wq, bq = nrm(lk[0], (H, H)), nrm(lk[1], (H,))
        wk, bk = nrm(lk[2], (H, H)), nrm(lk[3], (H,))
        wv, bv = nrm(lk[4], (H, H)), nrm(lk[5], (H,))
        wo, bo = nrm(lk[6], (H, H)), nrm(lk[7], (H,))
        w1, b1 = nrm(lk[8], (H, F)), nrm(lk[9], (F,))
        w2, b2 = nrm(lk[10], (F, H)), nrm(lk[11], (H,))
        # inject_lora: LoRA adapters on q_proj / v_proj merged into the effective weights.
        aq, bqL = nrm(lk[12], (H, r)), nrm(lk[13], (r, H))
        av, bvL = nrm(lk[14], (H, r)), nrm(lk[15], (r, H))
        wq = wq + lora_scale * (aq @ bqL)
        wv = wv + lora_scale * (av @ bvL)

        # Fused QKV weight in standard (H, 3H) layout: one lane-dense full-N matmul.
        w_qkv = jnp.concatenate([wq, wk, wv], axis=1)
        b_qkv = jnp.concatenate([bq, bk, bv])

        params["layers"].append(dict(
            ln1_g=jnp.ones((H,), jnp.float32), ln1_b=jnp.zeros((H,), jnp.float32),
            ln2_g=jnp.ones((H,), jnp.float32), ln2_b=jnp.zeros((H,), jnp.float32),
            w_qkv=w_qkv.astype(ACT_DTYPE), b_qkv=b_qkv,
            wo=wo.astype(ACT_DTYPE), bo=bo,
            w1=w1.astype(ACT_DTYPE), b1=b1,
            w2=w2.astype(ACT_DTYPE), b2=b2,
        ))
    return params


def opt_regressor_forward(params, embeddings, cfg):
    B, S, H = embeddings.shape
    nh = cfg["heads"]
    hd = H // nh
    scale = hd ** -0.5

    # learned positional embeddings (offset 2, positions 0..S-1); bf16 activations
    h = embeddings + params["pos_emb"][2:2 + S][None, :, :]
    h = h.astype(ACT_DTYPE).reshape(B * S, H)

    for layer in params["layers"]:
        # --- self-attention block (pre-LN, OPT do_layer_norm_before=True) ---
        residual = h
        qkv = ln_matmul(h, layer["ln1_g"], layer["ln1_b"],
                        layer["w_qkv"], layer["b_qkv"])                  # (M, 3H) lane-dense
        # split heads: one XLA transpose (layout plumbing), cheaper than N=hd matmuls
        qkv = qkv.reshape(B, S, 3, nh, hd).transpose(2, 0, 3, 1, 4).reshape(3, B * nh, S, hd)
        attn = flash_causal_attention(qkv, BH=B * nh, S=S, hd=hd, scale=scale)
        # merge heads back to (M, H) so the out-proj is a full-K (M,H)@(H,H) matmul
        attn = attn.reshape(B, nh, S, hd).transpose(0, 2, 1, 3).reshape(B * S, H)
        h = matmul_bias_residual(attn, layer["wo"], layer["bo"], residual)  # residual fused

        # --- feed-forward block (ReLU activation in OPT) ---
        residual = h
        f = ln_matmul(h, layer["ln2_g"], layer["ln2_b"],
                      layer["w1"], layer["b1"], activation="relu")
        h = matmul_bias_residual(f, layer["w2"], layer["b2"], residual)     # residual fused

    # final LayerNorm + 3-way head on the last token only: tiny (B,H) with B<8 rows and a
    # 3-wide output would force masked partial stores -> plain JAX.
    last = h.reshape(B, S, H)[:, -1, :].astype(jnp.float32)
    mu = jnp.mean(last, axis=-1, keepdims=True)
    var = jnp.mean(jnp.square(last - mu), axis=-1, keepdims=True)
    last = (last - mu) * lax.rsqrt(var + 1e-5) * params["lnf_g"] + params["lnf_b"]
    return last @ params["head_w"] + params["head_b"]                       # (B, 3) f32


if __name__ == "__main__":
    cfg = dict(hidden=32, heads=4, ffn=64, layers=2, max_pos=8,
               lora_r=4, lora_alpha=8)
    B, S = 2, 8

    root = jax.random.PRNGKey(0)
    k_params, k_emb = jax.random.split(root)
    params = init_params(k_params, cfg)
    embeddings = jax.random.normal(k_emb, (B, S, cfg["hidden"]), jnp.float32)

    fwd = jax.jit(functools.partial(opt_regressor_forward, cfg=cfg))
    out = jax.block_until_ready(fwd(params, embeddings))
    assert out.shape == (B, 3) and out.dtype == jnp.float32
    assert bool(jnp.all(jnp.isfinite(out)))
    print("KERNEL_OK")
</pallas_src>

<mosaic_0001>
module attributes {stable_mosaic.version = 11 : i64} {
  func.func @_ln_mm_kernel(%arg0: i32, %arg1: i32, %arg2: memref<16x32xbf16, #tpu.memory_space<vmem>>, %arg3: memref<1x32xf32, #tpu.memory_space<vmem>>, %arg4: memref<1x32xf32, #tpu.memory_space<vmem>>, %arg5: memref<32x96xbf16, #tpu.memory_space<vmem>>, %arg6: memref<1x96xf32, #tpu.memory_space<vmem>>, %arg7: memref<16x96xbf16, #tpu.memory_space<vmem>>, %arg8: memref<16x32xbf16, #tpu.memory_space<vmem>>) attributes {dimension_semantics = [#tpu.dimension_semantics<parallel>, #tpu.dimension_semantics<arbitrary>], iteration_bounds = array<i64: 1, 1>, scalar_prefetch = 0 : i64, scratch_operands = 1 : i64, tpu.core_type = #tpu.core_type<tc>, window_params = [{transform_indices = @transform_0, window_bounds = array<i64: 16, 32>}, {pipeline_mode = #tpu.pipeline_mode<synchronous>, transform_indices = @transform_1, window_bounds = array<i64: 1, 32>}, {pipeline_mode = #tpu.pipeline_mode<synchronous>, transform_indices = @transform_2, window_bounds = array<i64: 1, 32>}, {transform_indices = @transform_3, window_bounds = array<i64: 32, 96>}, {transform_indices = @transform_4, window_bounds = array<i64: 1, 96>}, {transform_indices = @transform_5, window_bounds = array<i64: 16, 96>}]} {
    %c0_i32 = arith.constant 0 : i32
    %0 = arith.cmpi eq, %arg1, %c0_i32 : i32
    %1 = arith.extui %0 : i1 to i32
    %c0_i32_0 = arith.constant 0 : i32
    %2 = arith.cmpi ne, %1, %c0_i32_0 : i32
    scf.if %2 {
      %c0_8 = arith.constant 0 : index
      %c0_9 = arith.constant 0 : index
      %11 = vector.load %arg2[%c0_8, %c0_9] : memref<16x32xbf16, #tpu.memory_space<vmem>>, vector<16x32xbf16>
      %12 = arith.extf %11 : vector<16x32xbf16> to vector<16x32xf32>
      %cst_10 = arith.constant dense<0.000000e+00> : vector<16xf32>
      %13 = vector.multi_reduction <add>, %12, %cst_10 [1] : vector<16x32xf32> to vector<16xf32>
      %14 = vector.shape_cast %13 : vector<16xf32> to vector<16x1xf32>
      %cst_11 = arith.constant 3.200000e+01 : f32
      %15 = vector.broadcast %cst_11 : f32 to vector<16x1xf32>
      %16 = arith.divf %14, %15 : vector<16x1xf32>
      %17 = vector.broadcast %16 : vector<16x1xf32> to vector<16x32xf32>
      %18 = arith.subf %12, %17 : vector<16x32xf32>
      %19 = arith.mulf %18, %18 : vector<16x32xf32>
      %cst_12 = arith.constant dense<0.000000e+00> : vector<16xf32>
      %20 = vector.multi_reduction <add>, %19, %cst_12 [1] : vector<16x32xf32> to vector<16xf32>
      %21 = vector.shape_cast %20 : vector<16xf32> to vector<16x1xf32>
      %cst_13 = arith.constant 3.200000e+01 : f32
      %22 = vector.broadcast %cst_13 : f32 to vector<16x1xf32>
      %23 = arith.divf %21, %22 : vector<16x1xf32>
      %24 = vector.broadcast %16 : vector<16x1xf32> to vector<16x32xf32>
      %25 = arith.subf %12, %24 : vector<16x32xf32>
      %cst_14 = arith.constant 9.99999974E-6 : f32
      %26 = vector.broadcast %cst_14 : f32 to vector<16x1xf32>
      %27 = arith.addf %23, %26 : vector<16x1xf32>
      %28 = math.rsqrt %27 : vector<16x1xf32>
      %29 = vector.broadcast %28 : vector<16x1xf32> to vector<16x32xf32>
      %30 = arith.mulf %25, %29 : vector<16x32xf32>
      %c0_15 = arith.constant 0 : index
      %c0_16 = arith.constant 0 : index
      %31 = vector.load %arg3[%c0_15, %c0_16] : memref<1x32xf32, #tpu.memory_space<vmem>>, vector<1x32xf32>
      %32 = vector.broadcast %31 : vector<1x32xf32> to vector<16x32xf32>
      %33 = arith.mulf %30, %32 : vector<16x32xf32>
      %c0_17 = arith.constant 0 : index
      %c0_18 = arith.constant 0 : index
      %34 = vector.load %arg4[%c0_17, %c0_18] : memref<1x32xf32, #tpu.memory_space<vmem>>, vector<1x32xf32>
      %35 = vector.broadcast %34 : vector<1x32xf32> to vector<16x32xf32>
      %36 = arith.addf %33, %35 : vector<16x32xf32>
      %37 = arith.truncf %36 : vector<16x32xf32> to vector<16x32xbf16>
      %c0_19 = arith.constant 0 : index
      %c0_20 = arith.constant 0 : index
      %38 = vector.load %arg8[%c0_19, %c0_20] : memref<16x32xbf16, #tpu.memory_space<vmem>>, vector<16x32xbf16>
      tpu.vector_store %arg8[%c0_19, %c0_20], %37 {strides = array<i32>} : memref<16x32xbf16, #tpu.memory_space<vmem>>, vector<16x32xbf16>,
    } else {
    }
    %c0 = arith.constant 0 : index
    %c0_1 = arith.constant 0 : index
    %3 = vector.load %arg8[%c0, %c0_1] : memref<16x32xbf16, #tpu.memory_space<vmem>>, vector<16x32xbf16>
    %c0_2 = arith.constant 0 : index
    %c0_3 = arith.constant 0 : index
    %4 = vector.load %arg5[%c0_2, %c0_3] : memref<32x96xbf16, #tpu.memory_space<vmem>>, vector<32x96xbf16>
    %cst = arith.constant dense<0.000000e+00> : vector<16x96xf32>
    %5 = tpu.matmul %3, %4, %cst {dimension_numbers = #tpu.dot_dimension_numbers<[1], [0], [0], [1], [0, 0, 1, 1], [], []>} : vector<16x32xbf16>, vector<32x96xbf16>, vector<16x96xf32> -> vector<16x96xf32>
    %c0_4 = arith.constant 0 : index
    %c0_5 = arith.constant 0 : index
    %6 = vector.load %arg6[%c0_4, %c0_5] : memref<1x96xf32, #tpu.memory_space<vmem>>, vector<1x96xf32>
    %7 = vector.broadcast %6 : vector<1x96xf32> to vector<16x96xf32>
    %8 = arith.addf %5, %7 : vector<16x96xf32>
    %9 = arith.truncf %8 : vector<16x96xf32> to vector<16x96xbf16>
    %c0_6 = arith.constant 0 : index
    %c0_7 = arith.constant 0 : index
    %10 = vector.load %arg7[%c0_6, %c0_7] : memref<16x96xbf16, #tpu.memory_space<vmem>>, vector<16x96xbf16>
    tpu.vector_store %arg7[%c0_6, %c0_7], %9 {strides = array<i32>} : memref<16x96xbf16, #tpu.memory_space<vmem>>, vector<16x96xbf16>,
    return
  }
  func.func @transform_0(%arg0: i32, %arg1: i32) -> (i32, i32) {
    %c0_i32 = arith.constant 0 : i32
    %c0_i32_0 = arith.constant 0 : i32
    return %arg0, %c0_i32 : i32, i32
  }
  func.func @transform_1(%arg0: i32, %arg1: i32) -> (i32, i32) {
    %c0_i32 = arith.constant 0 : i32
    %c0_i32_0 = arith.constant 0 : i32
    %c0_i32_1 = arith.constant 0 : i32
    return %c0_i32, %c0_i32_0 : i32, i32
  }
  func.func @transform_2(%arg0: i32, %arg1: i32) -> (i32, i32) {
    %c0_i32 = arith.constant 0 : i32
    %c0_i32_0 = arith.constant 0 : i32
    %c0_i32_1 = arith.constant 0 : i32
    return %c0_i32, %c0_i32_0 : i32, i32
  }
  func.func @transform_3(%arg0: i32, %arg1: i32) -> (i32, i32) {
    %c0_i32 = arith.constant 0 : i32
    %c0_i32_0 = arith.constant 0 : i32
    return %c0_i32, %arg1 : i32, i32
  }
  func.func @transform_4(%arg0: i32, %arg1: i32) -> (i32, i32) {
    %c0_i32 = arith.constant 0 : i32
    %c0_i32_0 = arith.constant 0 : i32
    return %c0_i32, %arg1 : i32, i32
  }
  func.func @transform_5(%arg0: i32, %arg1: i32) -> (i32, i32) {
    %c0_i32 = arith.constant 0 : i32
    return %arg0, %arg1 : i32, i32
  }
}

module attributes {stable_mosaic.version = 11 : i64} {
  func.func @_flash_kernel(%arg0: i32, %arg1: i32, %arg2: memref<1x1x8x8xbf16, #tpu.memory_space<vmem>>, %arg3: memref<1x1x8x8xbf16, #tpu.memory_space<vmem>>, %arg4: memref<1x1x8x8xbf16, #tpu.memory_space<vmem>>, %arg5: memref<1x8x8xbf16, #tpu.memory_space<vmem>>) attributes {dimension_semantics = [#tpu.dimension_semantics<parallel>, #tpu.dimension_semantics<arbitrary>], iteration_bounds = array<i64: 8, 1>, scalar_prefetch = 0 : i64, scratch_operands = 0 : i64, tpu.core_type = #tpu.core_type<tc>, window_params = [{transform_indices = @transform_0, window_bounds = array<i64: 1, 1, 8, 8>}, {transform_indices = @transform_1, window_bounds = array<i64: 1, 1, 8, 8>}, {transform_indices = @transform_2, window_bounds = array<i64: 1, 1, 8, 8>}, {transform_indices = @transform_3, window_bounds = array<i64: 1, 8, 8>}]} {
    %c0 = arith.constant 0 : index
    %c0_0 = arith.constant 0 : index
    %c0_1 = arith.constant 0 : index
    %c0_2 = arith.constant 0 : index
    %0 = vector.load %arg2[%c0, %c0_0, %c0_1, %c0_2] : memref<1x1x8x8xbf16, #tpu.memory_space<vmem>>, vector<1x1x8x8xbf16>
    %1 = vector.shape_cast %0 : vector<1x1x8x8xbf16> to vector<8x8xbf16>
    %cst = arith.constant 0xFF800000 : f32
    %2 = vector.broadcast %cst : f32 to vector<8x1xf32>
    %cst_3 = arith.constant 0.000000e+00 : f32
    %3 = vector.broadcast %cst_3 : f32 to vector<8x1xf32>
    %cst_4 = arith.constant 0.000000e+00 : f32
    %4 = vector.broadcast %cst_4 : f32 to vector<8x8xf32>
    %c0_i32 = arith.constant 0 : i32
    %5 = arith.subi %arg1, %c0_i32 : i32
    %6 = arith.addi %c0_i32, %5 : i32
    %c1_i32 = arith.constant 1 : i32
    %7:3 = scf.for %arg6 = %c0_i32 to %6 step %c1_i32 iter_args(%arg7 = %2, %arg8 = %3, %arg9 = %4) -> (vector<8x1xf32>, vector<8x1xf32>, vector<8x8xf32>)  : i32 {
      %c8_i32_20 = arith.constant 8 : i32
      %48 = arith.muli %arg6, %c8_i32_20 : i32
      %49 = tpu.assume_multiple %48, 8 : i32
      %c0_21 = arith.constant 0 : index
      %c0_22 = arith.constant 0 : index
      %50 = arith.index_cast %49 : i32 to index
      %c0_23 = arith.constant 0 : index
      %51 = vector.load %arg3[%c0_21, %c0_22, %50, %c0_23] : memref<1x1x8x8xbf16, #tpu.memory_space<vmem>>, vector<1x1x8x8xbf16>
      %52 = vector.shape_cast %51 : vector<1x1x8x8xbf16> to vector<8x8xbf16>
      %c0_24 = arith.constant 0 : index
      %c0_25 = arith.constant 0 : index
      %53 = arith.index_cast %49 : i32 to index
      %c0_26 = arith.constant 0 : index
      %54 = vector.load %arg4[%c0_24, %c0_25, %53, %c0_26] : memref<1x1x8x8xbf16, #tpu.memory_space<vmem>>, vector<1x1x8x8xbf16>
      %55 = vector.shape_cast %54 : vector<1x1x8x8xbf16> to vector<8x8xbf16>
      %cst_27 = arith.constant dense<0.000000e+00> : vector<8x8xf32>
      %56 = tpu.matmul %1, %52, %cst_27 {dimension_numbers = #tpu.dot_dimension_numbers<[1], [1], [0], [0], [0, 0, 1, 0], [], []>} : vector<8x8xbf16>, vector<8x8xbf16>, vector<8x8xf32> -> vector<8x8xf32>
      %cst_28 = arith.constant 0.353553385 : f32
      %57 = vector.broadcast %cst_28 : f32 to vector<8x8xf32>
      %58 = arith.mulf %56, %57 : vector<8x8xf32>
      %cst_29 = arith.constant dense<0xFF800000> : vector<8xf32>
      %59 = vector.multi_reduction <maximumf>, %58, %cst_29 [1] : vector<8x8xf32> to vector<8xf32>
      %60 = vector.shape_cast %59 : vector<8xf32> to vector<8x1xf32>
      %61 = arith.maximumf %arg7, %60 : vector<8x1xf32>
      %62 = arith.subf %arg7, %61 : vector<8x1xf32>
      %63 = math.exp %62 : vector<8x1xf32>
      %64 = vector.broadcast %61 : vector<8x1xf32> to vector<8x8xf32>
      %65 = arith.subf %58, %64 : vector<8x8xf32>
      %66 = math.exp %65 : vector<8x8xf32>
      %67 = arith.mulf %63, %arg8 : vector<8x1xf32>
      %cst_30 = arith.constant dense<0.000000e+00> : vector<8xf32>
      %68 = vector.multi_reduction <add>, %66, %cst_30 [1] : vector<8x8xf32> to vector<8xf32>
      %69 = vector.shape_cast %68 : vector<8xf32> to vector<8x1xf32>
      %70 = arith.addf %67, %69 : vector<8x1xf32>
      %71 = vector.broadcast %63 : vector<8x1xf32> to vector<8x8xf32>
      %72 = arith.mulf %71, %arg9 : vector<8x8xf32>
      %73 = arith.truncf %66 : vector<8x8xf32> to vector<8x8xbf16>
      %cst_31 = arith.constant dense<0.000000e+00> : vector<8x8xf32>
      %74 = tpu.matmul %73, %55, %cst_31 {dimension_numbers = #tpu.dot_dimension_numbers<[1], [0], [0], [1], [0, 0, 1, 1], [], []>} : vector<8x8xbf16>, vector<8x8xbf16>, vector<8x8xf32> -> vector<8x8xf32>
      %75 = arith.addf %72, %74 : vector<8x8xf32>
      scf.yield %61, %70, %75 : vector<8x1xf32>, vector<8x1xf32>, vector<8x8xf32>
    }
    %c8_i32 = arith.constant 8 : i32
    %8 = arith.muli %arg1, %c8_i32 : i32
    %9 = tpu.assume_multiple %8, 8 : i32
    %c0_5 = arith.constant 0 : index
    %c0_6 = arith.constant 0 : index
    %10 = arith.index_cast %9 : i32 to index
    %c0_7 = arith.constant 0 : index
    %11 = vector.load %arg3[%c0_5, %c0_6, %10, %c0_7] : memref<1x1x8x8xbf16, #tpu.memory_space<vmem>>, vector<1x1x8x8xbf16>
    %12 = vector.shape_cast %11 : vector<1x1x8x8xbf16> to vector<8x8xbf16>
    %c0_8 = arith.constant 0 : index
    %c0_9 = arith.constant 0 : index
    %13 = arith.index_cast %9 : i32 to index
    %c0_10 = arith.constant 0 : index
    %14 = vector.load %arg4[%c0_8, %c0_9, %13, %c0_10] : memref<1x1x8x8xbf16, #tpu.memory_space<vmem>>, vector<1x1x8x8xbf16>
    %15 = vector.shape_cast %14 : vector<1x1x8x8xbf16> to vector<8x8xbf16>
    %cst_11 = arith.constant dense<0.000000e+00> : vector<8x8xf32>
    %16 = tpu.matmul %1, %12, %cst_11 {dimension_numbers = #tpu.dot_dimension_numbers<[1], [1], [0], [0], [0, 0, 1, 0], [], []>} : vector<8x8xbf16>, vector<8x8xbf16>, vector<8x8xf32> -> vector<8x8xf32>
    %cst_12 = arith.constant 0.353553385 : f32
    %17 = vector.broadcast %cst_12 : f32 to vector<8x8xf32>
    %18 = arith.mulf %16, %17 : vector<8x8xf32>
    %19 = tpu.iota {dimensions = array<i32: 0>} : vector<8x8xi32>
    %20 = tpu.iota {dimensions = array<i32: 1>} : vector<8x8xi32>
    %21 = arith.cmpi sge, %19, %20 : vector<8x8xi32>
    %cst_13 = arith.constant -1.000000e+30 : f32
    %22 = vector.broadcast %cst_13 : f32 to vector<8x8xf32>
    %23 = arith.select %21, %18, %22 : vector<8x8xi1>, vector<8x8xf32>
    %cst_14 = arith.constant dense<0xFF800000> : vector<8xf32>
    %24 = vector.multi_reduction <maximumf>, %23, %cst_14 [1] : vector<8x8xf32> to vector<8xf32>
    %25 = vector.shape_cast %24 : vector<8xf32> to vector<8x1xf32>
    %26 = arith.maximumf %7#0, %25 : vector<8x1xf32>
    %27 = arith.subf %7#0, %26 : vector<8x1xf32>
    %28 = math.exp %27 : vector<8x1xf32>
    %29 = vector.broadcast %26 : vector<8x1xf32> to vector<8x8xf32>
    %30 = arith.subf %23, %29 : vector<8x8xf32>
    %31 = math.exp %30 : vector<8x8xf32>
    %32 = arith.mulf %28, %7#1 : vector<8x1xf32>
    %cst_15 = arith.constant dense<0.000000e+00> : vector<8xf32>
    %33 = vector.multi_reduction <add>, %31, %cst_15 [1] : vector<8x8xf32> to vector<8xf32>
    %34 = vector.shape_cast %33 : vector<8xf32> to vector<8x1xf32>
    %35 = arith.addf %32, %34 : vector<8x1xf32>
    %36 = vector.broadcast %28 : vector<8x1xf32> to vector<8x8xf32>
    %37 = arith.mulf %36, %7#2 : vector<8x8xf32>
    %38 = arith.truncf %31 : vector<8x8xf32> to vector<8x8xbf16>
    %cst_16 = arith.constant dense<0.000000e+00> : vector<8x8xf32>
    %39 = tpu.matmul %38, %15, %cst_16 {dimension_numbers = #tpu.dot_dimension_numbers<[1], [0], [0], [1], [0, 0, 1, 1], [], []>} : vector<8x8xbf16>, vector<8x8xbf16>, vector<8x8xf32> -> vector<8x8xf32>
    %40 = arith.addf %37, %39 : vector<8x8xf32>
    %41 = tpu.reciprocal %35 {approx = true} : vector<8x1xf32> -> vector<8x1xf32>
    %42 = vector.broadcast %41 : vector<8x1xf32> to vector<8x8xf32>
    %43 = arith.mulf %40, %42 : vector<8x8xf32>
    %44 = arith.truncf %43 : vector<8x8xf32> to vector<8x8xbf16>
    %c0_17 = arith.constant 0 : index
    %c0_18 = arith.constant 0 : index
    %c0_19 = arith.constant 0 : index
    %45 = vector.load %arg5[%c0_17, %c0_18, %c0_19] : memref<1x8x8xbf16, #tpu.memory_space<vmem>>, vector<1x8x8xbf16>
    %46 = vector.shape_cast %45 : vector<1x8x8xbf16> to vector<8x8xbf16>
    %47 = vector.shape_cast %44 : vector<8x8xbf16> to vector<1x8x8xbf16>
    tpu.vector_store %arg5[%c0_17, %c0_18, %c0_19], %47 {strides = array<i32>} : memref<1x8x8xbf16, #tpu.memory_space<vmem>>, vector<1x8x8xbf16>,
    return
  }
  func.func @transform_0(%arg0: i32, %arg1: i32) -> (i32, i32, i32, i32) {
    %c0_i32 = arith.constant 0 : i32
    %c0_i32_0 = arith.constant 0 : i32
    %c0_i32_1 = arith.constant 0 : i32
    return %c0_i32, %arg0, %arg1, %c0_i32_0 : i32, i32, i32, i32
  }
  func.func @transform_1(%arg0: i32, %arg1: i32) -> (i32, i32, i32, i32) {
    %c1_i32 = arith.constant 1 : i32
    %c0_i32 = arith.constant 0 : i32
    %c0_i32_0 = arith.constant 0 : i32
    %c0_i32_1 = arith.constant 0 : i32
    return %c1_i32, %arg0, %c0_i32, %c0_i32_0 : i32, i32, i32, i32
  }
  func.func @transform_2(%arg0: i32, %arg1: i32) -> (i32, i32, i32, i32) {
    %c2_i32 = arith.constant 2 : i32
    %c0_i32 = arith.constant 0 : i32
    %c0_i32_0 = arith.constant 0 : i32
    %c0_i32_1 = arith.constant 0 : i32
    return %c2_i32, %arg0, %c0_i32, %c0_i32_0 : i32, i32, i32, i32
  }
  func.func @transform_3(%arg0: i32, %arg1: i32) -> (i32, i32, i32) {
    %c0_i32 = arith.constant 0 : i32
    %c0_i32_0 = arith.constant 0 : i32
    return %arg0, %arg1, %c0_i32 : i32, i32, i32
  }
}

module attributes {stable_mosaic.version = 11 : i64} {
  func.func @_mm_res_kernel(%arg0: i32, %arg1: i32, %arg2: i32, %arg3: memref<16x32xbf16, #tpu.memory_space<vmem>>, %arg4: memref<32x32xbf16, #tpu.memory_space<vmem>>, %arg5: memref<1x32xf32, #tpu.memory_space<vmem>>, %arg6: memref<16x32xbf16, #tpu.memory_space<vmem>>, %arg7: memref<16x32xbf16, #tpu.memory_space<vmem>>, %arg8: memref<16x32xf32, #tpu.memory_space<vmem>>) attributes {dimension_semantics = [#tpu.dimension_semantics<parallel>, #tpu.dimension_semantics<parallel>, #tpu.dimension_semantics<arbitrary>], iteration_bounds = array<i64: 1, 1, 1>, scalar_prefetch = 0 : i64, scratch_operands = 1 : i64, tpu.core_type = #tpu.core_type<tc>, window_params = [{transform_indices = @transform_0, window_bounds = array<i64: 16, 32>}, {transform_indices = @transform_1, window_bounds = array<i64: 32, 32>}, {transform_indices = @transform_2, window_bounds = array<i64: 1, 32>}, {transform_indices = @transform_3, window_bounds = array<i64: 16, 32>}, {transform_indices = @transform_4, window_bounds = array<i64: 16, 32>}]} {
    %c0_i32 = arith.constant 0 : i32
    %0 = arith.cmpi eq, %arg2, %c0_i32 : i32
    %1 = arith.extui %0 : i1 to i32
    %c0_i32_0 = arith.constant 0 : i32
    %2 = arith.cmpi ne, %1, %c0_i32_0 : i32
    scf.if %2 {
      %cst_10 = arith.constant 0.000000e+00 : f32
      %12 = vector.broadcast %cst_10 : f32 to vector<16x32xf32>
      %c0_11 = arith.constant 0 : index
      %c0_12 = arith.constant 0 : index
      %13 = vector.load %arg8[%c0_11, %c0_12] : memref<16x32xf32, #tpu.memory_space<vmem>>, vector<16x32xf32>
      tpu.vector_store %arg8[%c0_11, %c0_12], %12 {strides = array<i32>} : memref<16x32xf32, #tpu.memory_space<vmem>>, vector<16x32xf32>,
    } else {
    }
    %c0 = arith.constant 0 : index
    %c0_1 = arith.constant 0 : index
    %3 = vector.load %arg8[%c0, %c0_1] : memref<16x32xf32, #tpu.memory_space<vmem>>, vector<16x32xf32>
    %c0_2 = arith.constant 0 : index
    %c0_3 = arith.constant 0 : index
    %4 = vector.load %arg3[%c0_2, %c0_3] : memref<16x32xbf16, #tpu.memory_space<vmem>>, vector<16x32xbf16>
    %c0_4 = arith.constant 0 : index
    %c0_5 = arith.constant 0 : index
    %5 = vector.load %arg4[%c0_4, %c0_5] : memref<32x32xbf16, #tpu.memory_space<vmem>>, vector<32x32xbf16>
    %cst = arith.constant dense<0.000000e+00> : vector<16x32xf32>
    %6 = tpu.matmul %4, %5, %cst {dimension_numbers = #tpu.dot_dimension_numbers<[1], [0], [0], [1], [0, 0, 1, 1], [], []>} : vector<16x32xbf16>, vector<32x32xbf16>, vector<16x32xf32> -> vector<16x32xf32>
    %7 = arith.addf %3, %6 : vector<16x32xf32>
    %c0_6 = arith.constant 0 : index
    %c0_7 = arith.constant 0 : index
    %8 = vector.load %arg8[%c0_6, %c0_7] : memref<16x32xf32, #tpu.memory_space<vmem>>, vector<16x32xf32>
    tpu.vector_store %arg8[%c0_6, %c0_7], %7 {strides = array<i32>} : memref<16x32xf32, #tpu.memory_space<vmem>>, vector<16x32xf32>,
    %c0_i32_8 = arith.constant 0 : i32
    %9 = arith.cmpi eq, %arg2, %c0_i32_8 : i32
    %10 = arith.extui %9 : i1 to i32
    %c0_i32_9 = arith.constant 0 : i32
    %11 = arith.cmpi ne, %10, %c0_i32_9 : i32
    scf.if %11 {
      %c0_10 = arith.constant 0 : index
      %c0_11 = arith.constant 0 : index
      %12 = vector.load %arg8[%c0_10, %c0_11] : memref<16x32xf32, #tpu.memory_space<vmem>>, vector<16x32xf32>
      %c0_12 = arith.constant 0 : index
      %c0_13 = arith.constant 0 : index
      %13 = vector.load %arg5[%c0_12, %c0_13] : memref<1x32xf32, #tpu.memory_space<vmem>>, vector<1x32xf32>
      %14 = vector.broadcast %13 : vector<1x32xf32> to vector<16x32xf32>
      %15 = arith.addf %12, %14 : vector<16x32xf32>
      %c0_14 = arith.constant 0 : index
      %c0_15 = arith.constant 0 : index
      %16 = vector.load %arg6[%c0_14, %c0_15] : memref<16x32xbf16, #tpu.memory_space<vmem>>, vector<16x32xbf16>
      %17 = arith.extf %16 : vector<16x32xbf16> to vector<16x32xf32>
      %18 = arith.addf %15, %17 : vector<16x32xf32>
      %19 = arith.truncf %18 : vector<16x32xf32> to vector<16x32xbf16>
      %c0_16 = arith.constant 0 : index
      %c0_17 = arith.constant 0 : index
      %20 = vector.load %arg7[%c0_16, %c0_17] : memref<16x32xbf16, #tpu.memory_space<vmem>>, vector<16x32xbf16>
      tpu.vector_store %arg7[%c0_16, %c0_17], %19 {strides = array<i32>} : memref<16x32xbf16, #tpu.memory_space<vmem>>, vector<16x32xbf16>,
    } else {
    }
    return
  }
  func.func @transform_0(%arg0: i32, %arg1: i32, %arg2: i32) -> (i32, i32) {
    %c0_i32 = arith.constant 0 : i32
    return %arg0, %arg2 : i32, i32
  }
  func.func @transform_1(%arg0: i32, %arg1: i32, %arg2: i32) -> (i32, i32) {
    %c0_i32 = arith.constant 0 : i32
    return %arg2, %arg1 : i32, i32
  }
  func.func @transform_2(%arg0: i32, %arg1: i32, %arg2: i32) -> (i32, i32) {
    %c0_i32 = arith.constant 0 : i32
    %c0_i32_0 = arith.constant 0 : i32
    return %c0_i32, %arg1 : i32, i32
  }
  func.func @transform_3(%arg0: i32, %arg1: i32, %arg2: i32) -> (i32, i32) {
    %c0_i32 = arith.constant 0 : i32
    return %arg0, %arg1 : i32, i32
  }
  func.func @transform_4(%arg0: i32, %arg1: i32, %arg2: i32) -> (i32, i32) {
    %c0_i32 = arith.constant 0 : i32
    return %arg0, %arg1 : i32, i32
  }
}

module attributes {stable_mosaic.version = 11 : i64} {
  func.func @_ln_mm_kernel(%arg0: i32, %arg1: i32, %arg2: memref<16x32xbf16, #tpu.memory_space<vmem>>, %arg3: memref<1x32xf32, #tpu.memory_space<vmem>>, %arg4: memref<1x32xf32, #tpu.memory_space<vmem>>, %arg5: memref<32x64xbf16, #tpu.memory_space<vmem>>, %arg6: memref<1x64xf32, #tpu.memory_space<vmem>>, %arg7: memref<16x64xbf16, #tpu.memory_space<vmem>>, %arg8: memref<16x32xbf16, #tpu.memory_space<vmem>>) attributes {dimension_semantics = [#tpu.dimension_semantics<parallel>, #tpu.dimension_semantics<arbitrary>], iteration_bounds = array<i64: 1, 1>, scalar_prefetch = 0 : i64, scratch_operands = 1 : i64, tpu.core_type = #tpu.core_type<tc>, window_params = [{transform_indices = @transform_0, window_bounds = array<i64: 16, 32>}, {pipeline_mode = #tpu.pipeline_mode<synchronous>, transform_indices = @transform_1, window_bounds = array<i64: 1, 32>}, {pipeline_mode = #tpu.pipeline_mode<synchronous>, transform_indices = @transform_2, window_bounds = array<i64: 1, 32>}, {transform_indices = @transform_3, window_bounds = array<i64: 32, 64>}, {transform_indices = @transform_4, window_bounds = array<i64: 1, 64>}, {transform_indices = @transform_5, window_bounds = array<i64: 16, 64>}]} {
    %c0_i32 = arith.constant 0 : i32
    %0 = arith.cmpi eq, %arg1, %c0_i32 : i32
    %1 = arith.extui %0 : i1 to i32
    %c0_i32_0 = arith.constant 0 : i32
    %2 = arith.cmpi ne, %1, %c0_i32_0 : i32
    scf.if %2 {
      %c0_9 = arith.constant 0 : index
      %c0_10 = arith.constant 0 : index
      %13 = vector.load %arg2[%c0_9, %c0_10] : memref<16x32xbf16, #tpu.memory_space<vmem>>, vector<16x32xbf16>
      %14 = arith.extf %13 : vector<16x32xbf16> to vector<16x32xf32>
      %cst_11 = arith.constant dense<0.000000e+00> : vector<16xf32>
      %15 = vector.multi_reduction <add>, %14, %cst_11 [1] : vector<16x32xf32> to vector<16xf32>
      %16 = vector.shape_cast %15 : vector<16xf32> to vector<16x1xf32>
      %cst_12 = arith.constant 3.200000e+01 : f32
      %17 = vector.broadcast %cst_12 : f32 to vector<16x1xf32>
      %18 = arith.divf %16, %17 : vector<16x1xf32>
      %19 = vector.broadcast %18 : vector<16x1xf32> to vector<16x32xf32>
      %20 = arith.subf %14, %19 : vector<16x32xf32>
      %21 = arith.mulf %20, %20 : vector<16x32xf32>
      %cst_13 = arith.constant dense<0.000000e+00> : vector<16xf32>
      %22 = vector.multi_reduction <add>, %21, %cst_13 [1] : vector<16x32xf32> to vector<16xf32>
      %23 = vector.shape_cast %22 : vector<16xf32> to vector<16x1xf32>
      %cst_14 = arith.constant 3.200000e+01 : f32
      %24 = vector.broadcast %cst_14 : f32 to vector<16x1xf32>
      %25 = arith.divf %23, %24 : vector<16x1xf32>
      %26 = vector.broadcast %18 : vector<16x1xf32> to vector<16x32xf32>
      %27 = arith.subf %14, %26 : vector<16x32xf32>
      %cst_15 = arith.constant 9.99999974E-6 : f32
      %28 = vector.broadcast %cst_15 : f32 to vector<16x1xf32>
      %29 = arith.addf %25, %28 : vector<16x1xf32>
      %30 = math.rsqrt %29 : vector<16x1xf32>
      %31 = vector.broadcast %30 : vector<16x1xf32> to vector<16x32xf32>
      %32 = arith.mulf %27, %31 : vector<16x32xf32>
      %c0_16 = arith.constant 0 : index
      %c0_17 = arith.constant 0 : index
      %33 = vector.load %arg3[%c0_16, %c0_17] : memref<1x32xf32, #tpu.memory_space<vmem>>, vector<1x32xf32>
      %34 = vector.broadcast %33 : vector<1x32xf32> to vector<16x32xf32>
      %35 = arith.mulf %32, %34 : vector<16x32xf32>
      %c0_18 = arith.constant 0 : index
      %c0_19 = arith.constant 0 : index
      %36 = vector.load %arg4[%c0_18, %c0_19] : memref<1x32xf32, #tpu.memory_space<vmem>>, vector<1x32xf32>
      %37 = vector.broadcast %36 : vector<1x32xf32> to vector<16x32xf32>
      %38 = arith.addf %35, %37 : vector<16x32xf32>
      %39 = arith.truncf %38 : vector<16x32xf32> to vector<16x32xbf16>
      %c0_20 = arith.constant 0 : index
      %c0_21 = arith.constant 0 : index
      %40 = vector.load %arg8[%c0_20, %c0_21] : memref<16x32xbf16, #tpu.memory_space<vmem>>, vector<16x32xbf16>
      tpu.vector_store %arg8[%c0_20, %c0_21], %39 {strides = array<i32>} : memref<16x32xbf16, #tpu.memory_space<vmem>>, vector<16x32xbf16>,
    } else {
    }
    %c0 = arith.constant 0 : index
    %c0_1 = arith.constant 0 : index
    %3 = vector.load %arg8[%c0, %c0_1] : memref<16x32xbf16, #tpu.memory_space<vmem>>, vector<16x32xbf16>
    %c0_2 = arith.constant 0 : index
    %c0_3 = arith.constant 0 : index
    %4 = vector.load %arg5[%c0_2, %c0_3] : memref<32x64xbf16, #tpu.memory_space<vmem>>, vector<32x64xbf16>
    %cst = arith.constant dense<0.000000e+00> : vector<16x64xf32>
    %5 = tpu.matmul %3, %4, %cst {dimension_numbers = #tpu.dot_dimension_numbers<[1], [0], [0], [1], [0, 0, 1, 1], [], []>} : vector<16x32xbf16>, vector<32x64xbf16>, vector<16x64xf32> -> vector<16x64xf32>
    %c0_4 = arith.constant 0 : index
    %c0_5 = arith.constant 0 : index
    %6 = vector.load %arg6[%c0_4, %c0_5] : memref<1x64xf32, #tpu.memory_space<vmem>>, vector<1x64xf32>
    %7 = vector.broadcast %6 : vector<1x64xf32> to vector<16x64xf32>
    %8 = arith.addf %5, %7 : vector<16x64xf32>
    %cst_6 = arith.constant 0.000000e+00 : f32
    %9 = vector.broadcast %cst_6 : f32 to vector<16x64xf32>
    %10 = arith.maximumf %8, %9 : vector<16x64xf32>
    %11 = arith.truncf %10 : vector<16x64xf32> to vector<16x64xbf16>
    %c0_7 = arith.constant 0 : index
    %c0_8 = arith.constant 0 : index
    %12 = vector.load %arg7[%c0_7, %c0_8] : memref<16x64xbf16, #tpu.memory_space<vmem>>, vector<16x64xbf16>
    tpu.vector_store %arg7[%c0_7, %c0_8], %11 {strides = array<i32>} : memref<16x64xbf16, #tpu.memory_space<vmem>>, vector<16x64xbf16>,
    return
  }
  func.func @transform_0(%arg0: i32, %arg1: i32) -> (i32, i32) {
    %c0_i32 = arith.constant 0 : i32
    %c0_i32_0 = arith.constant 0 : i32
    return %arg0, %c0_i32 : i32, i32
  }
  func.func @transform_1(%arg0: i32, %arg1: i32) -> (i32, i32) {
    %c0_i32 = arith.constant 0 : i32
    %c0_i32_0 = arith.constant 0 : i32
    %c0_i32_1 = arith.constant 0 : i32
    return %c0_i32, %c0_i32_0 : i32, i32
  }
  func.func @transform_2(%arg0: i32, %arg1: i32) -> (i32, i32) {
    %c0_i32 = arith.constant 0 : i32
    %c0_i32_0 = arith.constant 0 : i32
    %c0_i32_1 = arith.constant 0 : i32
    return %c0_i32, %c0_i32_0 : i32, i32
  }
  func.func @transform_3(%arg0: i32, %arg1: i32) -> (i32, i32) {
    %c0_i32 = arith.constant 0 : i32
    %c0_i32_0 = arith.constant 0 : i32
    return %c0_i32, %arg1 : i32, i32
  }
  func.func @transform_4(%arg0: i32, %arg1: i32) -> (i32, i32) {
    %c0_i32 = arith.constant 0 : i32
    %c0_i32_0 = arith.constant 0 : i32
    return %c0_i32, %arg1 : i32, i32
  }
  func.func @transform_5(%arg0: i32, %arg1: i32) -> (i32, i32) {
    %c0_i32 = arith.constant 0 : i32
    return %arg0, %arg1 : i32, i32
  }
}

module attributes {stable_mosaic.version = 11 : i64} {
  func.func @_mm_res_kernel(%arg0: i32, %arg1: i32, %arg2: i32, %arg3: memref<16x64xbf16, #tpu.memory_space<vmem>>, %arg4: memref<64x32xbf16, #tpu.memory_space<vmem>>, %arg5: memref<1x32xf32, #tpu.memory_space<vmem>>, %arg6: memref<16x32xbf16, #tpu.memory_space<vmem>>, %arg7: memref<16x32xbf16, #tpu.memory_space<vmem>>, %arg8: memref<16x32xf32, #tpu.memory_space<vmem>>) attributes {dimension_semantics = [#tpu.dimension_semantics<parallel>, #tpu.dimension_semantics<parallel>, #tpu.dimension_semantics<arbitrary>], iteration_bounds = array<i64: 1, 1, 1>, scalar_prefetch = 0 : i64, scratch_operands = 1 : i64, tpu.core_type = #tpu.core_type<tc>, window_params = [{transform_indices = @transform_0, window_bounds = array<i64: 16, 64>}, {transform_indices = @transform_1, window_bounds = array<i64: 64, 32>}, {transform_indices = @transform_2, window_bounds = array<i64: 1, 32>}, {transform_indices = @transform_3, window_bounds = array<i64: 16, 32>}, {transform_indices = @transform_4, window_bounds = array<i64: 16, 32>}]} {
    %c0_i32 = arith.constant 0 : i32
    %0 = arith.cmpi eq, %arg2, %c0_i32 : i32
    %1 = arith.extui %0 : i1 to i32
    %c0_i32_0 = arith.constant 0 : i32
    %2 = arith.cmpi ne, %1, %c0_i32_0 : i32
    scf.if %2 {
      %cst_10 = arith.constant 0.000000e+00 : f32
      %12 = vector.broadcast %cst_10 : f32 to vector<16x32xf32>
      %c0_11 = arith.constant 0 : index
      %c0_12 = arith.constant 0 : index
      %13 = vector.load %arg8[%c0_11, %c0_12] : memref<16x32xf32, #tpu.memory_space<vmem>>, vector<16x32xf32>
      tpu.vector_store %arg8[%c0_11, %c0_12], %12 {strides = array<i32>} : memref<16x32xf32, #tpu.memory_space<vmem>>, vector<16x32xf32>,
    } else {
    }
    %c0 = arith.constant 0 : index
    %c0_1 = arith.constant 0 : index
    %3 = vector.load %arg8[%c0, %c0_1] : memref<16x32xf32, #tpu.memory_space<vmem>>, vector<16x32xf32>
    %c0_2 = arith.constant 0 : index
    %c0_3 = arith.constant 0 : index
    %4 = vector.load %arg3[%c0_2, %c0_3] : memref<16x64xbf16, #tpu.memory_space<vmem>>, vector<16x64xbf16>
    %c0_4 = arith.constant 0 : index
    %c0_5 = arith.constant 0 : index
    %5 = vector.load %arg4[%c0_4, %c0_5] : memref<64x32xbf16, #tpu.memory_space<vmem>>, vector<64x32xbf16>
    %cst = arith.constant dense<0.000000e+00> : vector<16x32xf32>
    %6 = tpu.matmul %4, %5, %cst {dimension_numbers = #tpu.dot_dimension_numbers<[1], [0], [0], [1], [0, 0, 1, 1], [], []>} : vector<16x64xbf16>, vector<64x32xbf16>, vector<16x32xf32> -> vector<16x32xf32>
    %7 = arith.addf %3, %6 : vector<16x32xf32>
    %c0_6 = arith.constant 0 : index
    %c0_7 = arith.constant 0 : index
    %8 = vector.load %arg8[%c0_6, %c0_7] : memref<16x32xf32, #tpu.memory_space<vmem>>, vector<16x32xf32>
    tpu.vector_store %arg8[%c0_6, %c0_7], %7 {strides = array<i32>} : memref<16x32xf32, #tpu.memory_space<vmem>>, vector<16x32xf32>,
    %c0_i32_8 = arith.constant 0 : i32
    %9 = arith.cmpi eq, %arg2, %c0_i32_8 : i32
    %10 = arith.extui %9 : i1 to i32
    %c0_i32_9 = arith.constant 0 : i32
    %11 = arith.cmpi ne, %10, %c0_i32_9 : i32
    scf.if %11 {
      %c0_10 = arith.constant 0 : index
      %c0_11 = arith.constant 0 : index
      %12 = vector.load %arg8[%c0_10, %c0_11] : memref<16x32xf32, #tpu.memory_space<vmem>>, vector<16x32xf32>
      %c0_12 = arith.constant 0 : index
      %c0_13 = arith.constant 0 : index
      %13 = vector.load %arg5[%c0_12, %c0_13] : memref<1x32xf32, #tpu.memory_space<vmem>>, vector<1x32xf32>
      %14 = vector.broadcast %13 : vector<1x32xf32> to vector<16x32xf32>
      %15 = arith.addf %12, %14 : vector<16x32xf32>
      %c0_14 = arith.constant 0 : index
      %c0_15 = arith.constant 0 : index
      %16 = vector.load %arg6[%c0_14, %c0_15] : memref<16x32xbf16, #tpu.memory_space<vmem>>, vector<16x32xbf16>
      %17 = arith.extf %16 : vector<16x32xbf16> to vector<16x32xf32>
      %18 = arith.addf %15, %17 : vector<16x32xf32>
      %19 = arith.truncf %18 : vector<16x32xf32> to vector<16x32xbf16>
      %c0_16 = arith.constant 0 : index
      %c0_17 = arith.constant 0 : index
      %20 = vector.load %arg7[%c0_16, %c0_17] : memref<16x32xbf16, #tpu.memory_space<vmem>>, vector<16x32xbf16>
      tpu.vector_store %arg7[%c0_16, %c0_17], %19 {strides = array<i32>} : memref<16x32xbf16, #tpu.memory_space<vmem>>, vector<16x32xbf16>,
    } else {
    }
    return
  }
  func.func @transform_0(%arg0: i32, %arg1: i32, %arg2: i32) -> (i32, i32) {
    %c0_i32 = arith.constant 0 : i32
    return %arg0, %arg2 : i32, i32
  }
  func.func @transform_1(%arg0: i32, %arg1: i32, %arg2: i32) -> (i32, i32) {
    %c0_i32 = arith.constant 0 : i32
    return %arg2, %arg1 : i32, i32
  }
  func.func @transform_2(%arg0: i32, %arg1: i32, %arg2: i32) -> (i32, i32) {
    %c0_i32 = arith.constant 0 : i32
    %c0_i32_0 = arith.constant 0 : i32
    return %c0_i32, %arg1 : i32, i32
  }
  func.func @transform_3(%arg0: i32, %arg1: i32, %arg2: i32) -> (i32, i32) {
    %c0_i32 = arith.constant 0 : i32
    return %arg0, %arg1 : i32, i32
  }
  func.func @transform_4(%arg0: i32, %arg1: i32, %arg2: i32) -> (i32, i32) {
    %c0_i32 = arith.constant 0 : i32
    return %arg0, %arg1 : i32, i32
  }
}

</mosaic_0001>

<llo_original>
// kernel: opt_regressor_forward.10
$region0: #{opt_regressor_forward.10}
  #allocation0 [shape = 'u32[]', space=smem, size = 0x4, offset = 0x4, fixed_abs, tag = 'smem constant byte address 0x4 - core index']
  #allocation1 [shape = 'u32[144,128]{1,0:T(1,128)}', space=vmem, size = 0x12000, scoped, tag = 'internal scratch']
  #allocation2 [shape = 'bf16[16,32]{1,0:T(8,128)(2,1)}', space=vmem, size = 0x1000, scoped, tag = 'scratch operand']
  %s0 = inlined_call_operand.vmem [shape: bf16[16,32], index: 0, kind: input, shape index: {}]
  %s1 = inlined_call_operand.vmem [shape: f32[1,32], index: 1, kind: input, shape index: {}]
  %s2 = inlined_call_operand.vmem [shape: f32[1,32], index: 2, kind: input, shape index: {}]
  %s3 = inlined_call_operand.vmem [shape: bf16[32,96], index: 3, kind: input, shape index: {}]
  %s4 = inlined_call_operand.vmem [shape: f32[1,96], index: 4, kind: input, shape index: {}]
  %s5 = inlined_call_operand.vmem [shape: bf16[16,96], index: 5, kind: output, shape index: {}]
  %s6 = sld [smem:[#allocation0]]
  $region34: #{opt_regressor_forward.10} parent=0
    _
  %s8 = ssub.s32 1, %s6
  %s9 = scalar_select 0, %s8, %s6
  // Predicated region
  $region2: #{opt_regressor_forward.10} parent=0 // pred_check
    _
  $region3: #{opt_regressor_forward.10} parent=0 // pred_check_branch
    %11 = sbr.rel (0) target = $region5
  $region4: #{opt_regressor_forward.10} parent=0 // pred_region
    _
  $region5: #{opt_regressor_forward.10} parent=0 // pred_fallthru
    _
  // Predicated region
  $region6: #{opt_regressor_forward.10} parent=0 // pred_check
    _
  $region7: #{opt_regressor_forward.10} parent=0 // pred_check_branch
    %13 = sbr.rel (0) target = $region9
  $region8: #{opt_regressor_forward.10} parent=0 // pred_region
    _
  $region9: #{opt_regressor_forward.10} parent=0 // pred_fallthru
    _
  // Predicated region
  $region10: #{opt_regressor_forward.10} parent=0 // pred_check
    _
  $region11: #{opt_regressor_forward.10} parent=0 // pred_check_branch
    %15 = sbr.rel (0) target = $region13
  $region12: #{opt_regressor_forward.10} parent=0 // pred_region
    _
  $region13: #{opt_regressor_forward.10} parent=0 // pred_fallthru
    _
  // Predicated region
  $region14: #{opt_regressor_forward.10} parent=0 // pred_check
    _
  $region15: #{opt_regressor_forward.10} parent=0 // pred_check_branch
    %17 = sbr.rel (0) target = $region17
  $region16: #{opt_regressor_forward.10} parent=0 // pred_region
    _
  $region17: #{opt_regressor_forward.10} parent=0 // pred_fallthru
    _
  // Predicated region
  $region18: #{opt_regressor_forward.10} parent=0 // pred_check
    _
  $region19: #{opt_regressor_forward.10} parent=0 // pred_check_branch
    %19 = sbr.rel (0) target = $region21
  $region20: #{opt_regressor_forward.10} parent=0 // pred_region
    _
  $region21: #{opt_regressor_forward.10} parent=0 // pred_fallthru
    _
  %p21 = scmp.eq.s32.totalorder 0, 0
  // Predicated region
  $region22: #{opt_regressor_forward.10} parent=0 // pred_check
    %p22 = pneg %p21
  $region23: #{opt_regressor_forward.10} parent=0 // pred_check_branch
    %24 = sbr.rel (%p22) target = $region25
  $region24: #{opt_regressor_forward.10} parent=0 // pred_region
    %v25 = vld [vmem:[%s0] sm:$0xf]
    %v26 = vld [vmem:[%s0 + $0x4] sm:$0xf]
    %v27 = vunpack.c.l.bf16 %v25
    %v28 = vunpack.c.l.bf16 %v26
    %vm29 = vcmask 261120
    %v30 = vsel %vm29, %v27, 0.0
    %31 = vadd.xlane.f32.xlu0 %v30
    %v32 = vpop.xlane.xlu0 %31
    %v33 = vsel %vm29, %v28, 0.0
    %34 = vadd.xlane.f32.xlu0 %v33
    %v35 = vpop.xlane.xlu0 %34
    %v36 = vrcp.pop 32.0
    %v37 = vmul.f32 %v32, %v36
    %v38 = vmul.f32 %v35, %v36
    %v39 = vsub.f32 %v27, %v37
    %v40 = vsub.f32 %v28, %v38
    %v41 = vmul.f32 %v39, %v39
    %v42 = vmul.f32 %v40, %v40
    %v43 = vsel %vm29, %v41, 0.0
    %44 = vadd.xlane.f32.xlu0 %v43
    %v45 = vpop.xlane.xlu0 %44
    %v46 = vsel %vm29, %v42, 0.0
    %47 = vadd.xlane.f32.xlu0 %v46
    %v48 = vpop.xlane.xlu0 %47
    %v49 = vmul.f32 %v45, %v36
    %v50 = vmul.f32 %v48, %v36
    %v51 = vadd.f32 %v49, 1e-05
    %v52 = vadd.f32 %v50, 1e-05
    %v53 = vrsqrt.pop %v51
    %v54 = vrsqrt.pop %v52
    %v55 = vmul.f32 %v39, %v53
    %v56 = vmul.f32 %v40, %v54
    %v57 = vld [vmem:[%s1] sm:$0x1]
    %v59 = vlaneseq
    %v60 = vshrl.u32 %v59, 7
    %v61 = vsub.s32 0, %v60
    %v62 = vrot.slane %v57, %v61
    %v64 = vmul.f32 %v55, %v62
    %v65 = vmul.f32 %v56, %v62
    %v66 = vld [vmem:[%s2] sm:$0x1]
    %v68 = vlaneseq
    %v69 = vshrl.u32 %v68, 7
    %v70 = vsub.s32 0, %v69
    %v71 = vrot.slane %v66, %v70
    %v73 = vadd.f32 %v64, %v71
    %v74 = vadd.f32 %v65, %v71
    %v75 = vpack.c.bf16 %v74, %v73
    %v77 = vunpack.c.l.b16 %v75
    %v78 = vunpack.c.h.b16 %v75
    %v79 = vpack.c.b16 %v77, %v77
    %v80 = vpack.c.b16 %v78, %v78
    %vm83 = vcmask 257024
    %84 = vst.msk [vmem:[#allocation2] sm:$0xf] %vm83, %v79
    %85 = vst.msk [vmem:[#allocation2 + $0x4] sm:$0xf] %vm83, %v80
  $region25: #{opt_regressor_forward.10} parent=0 // pred_fallthru
    _
  %v86 = vld [vmem:[#allocation2] sm:$0xf]
  %v87 = vld [vmem:[#allocation2 + $0x4] sm:$0xf]
  %v88 = vld [vmem:[%s3] sm:$0xf]
  %v89 = vld [vmem:[%s3 + $0x4] sm:$0xf]
  %v90 = vld [vmem:[%s3 + $0x8] sm:$0xf]
  %v91 = vld [vmem:[%s3 + $0xc] sm:$0xf]
  %v92 = vld [vmem:[%s4] sm:$0x1]
  %v94 = vlaneseq
  %v95 = vshrl.u32 %v94, 7
  %v96 = vsub.s32 0, %v95
  %v97 = vrot.slane %v92, %v96
  %v101 = vunpack.c.l.b16 %v86
  %v102 = vunpack.c.l.b16 %v87
  %v103 = vpack.c.b16 %v102, %v101
  %v108 = vunpack.c.l.b16 %v88
  %v109 = vunpack.c.l.b16 %v89
  %v110 = vunpack.c.l.b16 %v90
  %v111 = vunpack.c.l.b16 %v91
  %v112 = vpack.c.b16 %v109, %v108
  %v113 = vpack.c.b16 %v111, %v110
  %vm116 = vcmask 261120
  %v118 = vsel %vm116, %v103, 0
  %120 = vmatprep.subr.bf16.mxu0 0
  %121 = vmatpush1.bf16.msra.mxu0 0
  %122 = vmatprep.subr.bf16.mxu0 0
  %123 = vmatpush1.bf16.msra.mxu0 0
  %124 = vmatprep.subr.bf16.mxu0 0
  %125 = vmatpush1.bf16.msra.mxu0 0
  %126 = vmatprep.subr.bf16.mxu0 0
  %127 = vmatpush1.bf16.msra.mxu0 0
  %128 = vmatprep.subr.bf16.mxu0 0
  %129 = vmatpush1.bf16.msra.mxu0 0
  %130 = vmatprep.subr.bf16.mxu0 0
  %131 = vmatpush1.bf16.msra.mxu0 0
  %132 = vmatprep.subr.bf16.mxu0 0
  %133 = vmatpush1.bf16.msra.mxu0 %v113
  %134 = vmatprep.subr.bf16.mxu0 0
  %135 = vmatpush1.bf16.msra.mxu0 %v112
  %136 = vmatprep.subr.bf16.mxu0 0
  %137 = vmatpush2.bf16.msra.mxu0 0
  %138 = vmatprep.subr.bf16.mxu0 0
  %139 = vmatpush2.bf16.msra.mxu0 0
  %140 = vmatprep.subr.bf16.mxu0 0
  %141 = vmatpush2.bf16.msra.mxu0 0
  %142 = vmatprep.subr.bf16.mxu0 0
  %143 = vmatpush2.bf16.msra.mxu0 0
  %144 = vmatprep.subr.bf16.mxu0 0
  %145 = vmatpush2.bf16.msra.mxu0 0
  %146 = vmatprep.subr.bf16.mxu0 0
  %147 = vmatpush2.bf16.msra.mxu0 0
  %148 = vmatprep.subr.bf16.mxu0 0
  %149 = vmatpush2.bf16.msra.mxu0 0
  %150 = vmatprep.subr.bf16.mxu0 0
  %151 = vmatpush2.bf16.msra.mxu0 0
  %152 = vmatprep.mubr.bf16.mxu0 0
  %153 = vmatmul.mubr.bf16.gmra.mxu0 %v118
  %v154 = vpop.f32.mrf.mxu0
  %v155 = vadd.f32 %v97, %v154
  %v156 = vpop.f32.mrf.mxu0
  %v157 = vpop.f32.mrf.mxu0
  %v158 = vadd.f32 %v97, %v157
  %v159 = vpop.f32.mrf.mxu0
  %160 = vdwg.mxu0
  %v161 = vpack.c.bf16 %v158, %v155
  %v163 = vunpack.c.l.b16 %v161
  %v164 = vunpack.c.h.b16 %v161
  %v165 = vpack.c.b16 %v163, %v163
  %v166 = vpack.c.b16 %v164, %v164
  %vm169 = vcmask 781312
  %170 = vst.msk [vmem:[%s5] sm:$0xf] %vm169, %v165
  %171 = vst.msk [vmem:[%s5 + $0x4] sm:$0xf] %vm169, %v166
  // Predicated region
  $region26: #{opt_regressor_forward.10} parent=0 // pred_check
    _
  $region27: #{opt_regressor_forward.10} parent=0 // pred_check_branch
    %173 = sbr.rel (0) target = $region29
  $region28: #{opt_regressor_forward.10} parent=0 // pred_region
    _
  $region29: #{opt_regressor_forward.10} parent=0 // pred_fallthru
    _
  // Predicated region
  $region30: #{opt_regressor_forward.10} parent=0 // pred_check
    _
  $region31: #{opt_regressor_forward.10} parent=0 // pred_check_branch
    %175 = sbr.rel (0) target = $region33
  $region32: #{opt_regressor_forward.10} parent=0 // pred_region
    _
  $region33: #{opt_regressor_forward.10} parent=0 // pred_fallthru
    _

// kernel: opt_regressor_forward.11
$region0: #{opt_regressor_forward.11}
  #allocation0 [shape = 'u32[]', space=smem, size = 0x4, offset = 0x4, fixed_abs, tag = 'smem constant byte address 0x4 - core index']
  #allocation1 [shape = 'u32[144,128]{1,0:T(1,128)}', space=vmem, size = 0x12000, scoped, tag = 'internal scratch']
  %s0 = inlined_call_operand.vmem [shape: bf16[3,8,8,8], index: 0, kind: input, shape index: {}, may-alias: {0,1,2}]
  %s1 = inlined_call_operand.vmem [shape: bf16[3,8,8,8], index: 1, kind: input, shape index: {}, may-alias: {0,1,2}]
  %s2 = inlined_call_operand.vmem [shape: bf16[3,8,8,8], index: 2, kind: input, shape index: {}, may-alias: {0,1,2}]
  %s3 = inlined_call_operand.vmem [shape: bf16[8,8,8], index: 3, kind: output, shape index: {}]
  %s4 = sld [smem:[#allocation0]]
  $region52: #{opt_regressor_forward.11} parent=0
    _
  %s6 = ssub.s32 1, %s4
  %s7 = scalar_select 0, %s6, %s4
  loop: start=0, step=1, limit=10
  $region2: #{opt_regressor_forward.11} parent=0 // loop_pre_header
    _
  $region3: #{opt_regressor_forward.11} parent=0 // loop_header
    %s9 = sphi 0, %s13
    %p10 = scmp.ge.s32.totalorder %s9, 10
    %s16 = sphi 0, %s28
    %s17 = sphi 0, %s24
    %s18 = sphi 0, %s16
    %s19 = sphi 0, %s17
    %s20 = sphi 0, %s18
    %s21 = sphi 0, %s19
    %s33 = sphi 0, %s35
    %s36 = sphi 0, %s33
    %s37 = sphi 0, %s36
    %s53 = sphi 0, %s37
    %s59 = sphi 0, %s61
    %s62 = sphi 0, %s59
    %s63 = sphi 0, %s62
    %s79 = sphi 0, %s63
    %s85 = sphi 0, %s87
    %s88 = sphi 0, %s85
    %s89 = sphi 0, %s88
    %s105 = sphi 0, %s89
    %s113 = sphi 0, %s115
    %s116 = sphi 0, %s113
    %s117 = sphi 0, %s116
    %s133 = sphi 0, %s117
  $region4: #{opt_regressor_forward.11} parent=0 // loop_header_branch
    %12 = sbr.rel (%p10) target = $region8
  $region5: #{opt_regressor_forward.11} parent=0 // loop_body
    %s14 = ssub.s32 %s9, 1
    %s15 = ssub.s32 %s9, 2
    %s22 = sadd.s32 1, %s17
    %p23 = scmp.ge.s32.totalorder %s22, 1
    %s24 = scalar_select %p23, 0, %s22
    %s25 = sadd.s32 1, %s16
    %s26 = scalar_select %p23, %s25, %s16
    %p27 = scmp.ge.s32.totalorder %s26, 8
    %s28 = scalar_select %p27, 0, %s26
    %s29 = ssub.s32 %s16, %s28
    %s30 = ssub.s32 %s17, %s24
    %s31 = sor.u32 %s29, %s30
    %p32 = scmp.eq.s32.totalorder %s31, 0
    %s34 = sadd.s32 %s33, 1
    %s35 = scalar_select %p32, %s33, %s34
    %p38 = pneg %p32
    %p39 = scmp.eq.s32.totalorder %s9, 7
    %p40 = por %p38, %p39
    %p41 = scmp.ne.s32.totalorder %s33, %s36
    %p42 = scmp.eq.s32.totalorder %s9, 0
    %p43 = por %p41, %p42
    %p44 = scmp.ne.s32.totalorder %s33, %s36
    %p45 = scmp.eq.s32.totalorder %s14, 7
    %p46 = por %p44, %p45
    %p47 = scmp.ne.s32.totalorder %s36, %s37
    %p48 = scmp.eq.s32.totalorder %s14, 0
    %p49 = por %p47, %p48
    %p50 = scmp.ne.s32.totalorder %s36, %s37
    %p51 = scmp.eq.s32.totalorder %s15, 7
    %p52 = por %p50, %p51
    %p54 = scmp.ne.s32.totalorder %s37, %s53
    %p55 = scmp.eq.s32.totalorder %s15, 0
    %p56 = por %p54, %p55
    %s57 = ssub.s32 %s16, %s28
    %p58 = scmp.eq.s32.totalorder %s57, 0
    %s60 = sadd.s32 %s59, 1
    %s61 = scalar_select %p58, %s59, %s60
    %p64 = pneg %p58
    %p65 = scmp.eq.s32.totalorder %s9, 7
    %p66 = por %p64, %p65
    %p67 = scmp.ne.s32.totalorder %s59, %s62
    %p68 = scmp.eq.s32.totalorder %s9, 0
    %p69 = por %p67, %p68
    %p70 = scmp.ne.s32.totalorder %s59, %s62
    %p71 = scmp.eq.s32.totalorder %s14, 7
    %p72 = por %p70, %p71
    %p73 = scmp.ne.s32.totalorder %s62, %s63
    %p74 = scmp.eq.s32.totalorder %s14, 0
    %p75 = por %p73, %p74
    %p76 = scmp.ne.s32.totalorder %s62, %s63
    %p77 = scmp.eq.s32.totalorder %s15, 7
    %p78 = por %p76, %p77
    %p80 = scmp.ne.s32.totalorder %s63, %s79
    %p81 = scmp.eq.s32.totalorder %s15, 0
    %p82 = por %p80, %p81
    %s83 = ssub.s32 %s16, %s28
    %p84 = scmp.eq.s32.totalorder %s83, 0
    %s86 = sadd.s32 %s85, 1
    %s87 = scalar_select %p84, %s85, %s86
    %p90 = pneg %p84
    %p91 = scmp.eq.s32.totalorder %s9, 7
    %p92 = por %p90, %p91
    %p93 = scmp.ne.s32.totalorder %s85, %s88
    %p94 = scmp.eq.s32.totalorder %s9, 0
    %p95 = por %p93, %p94
    %p96 = scmp.ne.s32.totalorder %s85, %s88
    %p97 = scmp.eq.s32.totalorder %s14, 7
    %p98 = por %p96, %p97
    %p99 = scmp.ne.s32.totalorder %s88, %s89
    %p100 = scmp.eq.s32.totalorder %s14, 0
    %p101 = por %p99, %p100
    %p102 = scmp.ne.s32.totalorder %s88, %s89
    %p103 = scmp.eq.s32.totalorder %s15, 7
    %p104 = por %p102, %p103
    %p106 = scmp.ne.s32.totalorder %s89, %s105
    %p107 = scmp.eq.s32.totalorder %s15, 0
    %p108 = por %p106, %p107
    %s109 = ssub.s32 %s16, %s28
    %s110 = ssub.s32 %s17, %s24
    %s111 = sor.u32 %s109, %s110
    %p112 = scmp.eq.s32.totalorder %s111, 0
    %s114 = sadd.s32 %s113, 1
    %s115 = scalar_select %p112, %s113, %s114
    %p118 = pneg %p112
    %p119 = scmp.eq.s32.totalorder %s9, 7
    %p120 = por %p118, %p119
    %p121 = scmp.ne.s32.totalorder %s113, %s116
    %p122 = scmp.eq.s32.totalorder %s9, 0
    %p123 = por %p121, %p122
    %p124 = scmp.ne.s32.totalorder %s113, %s116
    %p125 = scmp.eq.s32.totalorder %s14, 7
    %p126 = por %p124, %p125
    %p127 = scmp.ne.s32.totalorder %s116, %s117
    %p128 = scmp.eq.s32.totalorder %s14, 0
    %p129 = por %p127, %p128
    %p130 = scmp.ne.s32.totalorder %s116, %s117
    %p131 = scmp.eq.s32.totalorder %s15, 7
    %p132 = por %p130, %p131
    %p134 = scmp.ne.s32.totalorder %s117, %s133
    %p135 = scmp.eq.s32.totalorder %s15, 0
    %p136 = por %p134, %p135
    %p137 = scmp.le.s32.totalorder 1, %s9
    %p138 = scmp.lt.s32.totalorder %s9, 9
    %p139 = pnand %p137, %p138
    %p140 = pneg %p139
    // Predicated region
    $region9: #{opt_regressor_forward.11} parent=5 // pred_check
      _
    $region10: #{opt_regressor_forward.11} parent=5 // pred_check_branch
      %142 = sbr.rel (%p139) target = $region12
    $region11: #{opt_regressor_forward.11} parent=5 // pred_region
      %s143 = ssub.s32 %s9, 1
    $region12: #{opt_regressor_forward.11} parent=5 // pred_fallthru
      _
    %p144 = scmp.lt.s32.totalorder %s9, 8
    // Predicated region
    $region13: #{opt_regressor_forward.11} parent=5 // pred_check
      %p145 = pneg %p144
    $region14: #{opt_regressor_forward.11} parent=5 // pred_check_branch
      %147 = sbr.rel (%p145) target = $region16
    $region15: #{opt_regressor_forward.11} parent=5 // pred_region
      // Predicated region
      $region17: #{opt_regressor_forward.11} parent=15 // pred_check
        %p148 = pneg %p43
      $region18: #{opt_regressor_forward.11} parent=15 // pred_check_branch
        %150 = sbr.rel (%p148) target = $region20
      $region19: #{opt_regressor_forward.11} parent=15 // pred_region
        %p151 = scmp.lt.s32.totalorder %s16, 7
        %s152 = scalar_select %p151, %s16, 7
        %p153 = scmp.lt.s32.totalorder %s17, 0
        %s154 = scalar_select %p153, %s17, 0
        %s155 = sadd.s32 %s154, %s152
        %s156 = smul.addr %s155, 4
        %s157 = scalar_lea.vmem %s0, %s156
      $region20: #{opt_regressor_forward.11} parent=15 // pred_fallthru
        _
      // Predicated region
      $region21: #{opt_regressor_forward.11} parent=15 // pred_check
        %p158 = pneg %p69
      $region22: #{opt_regressor_forward.11} parent=15 // pred_check_branch
        %160 = sbr.rel (%p158) target = $region24
      $region23: #{opt_regressor_forward.11} parent=15 // pred_region
        %p161 = scmp.lt.s32.totalorder %s16, 7
        %s162 = scalar_select %p161, %s16, 7
        %s163 = sadd.s32 %s162, 8
        %s164 = smul.addr %s163, 4
        %s165 = scalar_lea.vmem %s1, %s164
      $region24: #{opt_regressor_forward.11} parent=15 // pred_fallthru
        _
      // Predicated region
      $region25: #{opt_regressor_forward.11} parent=15 // pred_check
        %p166 = pneg %p95
      $region26: #{opt_regressor_forward.11} parent=15 // pred_check_branch
        %168 = sbr.rel (%p166) target = $region28
      $region27: #{opt_regressor_forward.11} parent=15 // pred_region
        %p169 = scmp.lt.s32.totalorder %s16, 7
        %s170 = scalar_select %p169, %s16, 7
        %s171 = sadd.s32 %s170, 16
        %s172 = smul.addr %s171, 4
        %s173 = scalar_lea.vmem %s2, %s172
      $region28: #{opt_regressor_forward.11} parent=15 // pred_fallthru
        _
    $region16: #{opt_regressor_forward.11} parent=5 // pred_fallthru
      _
    %p174 = scmp.le.s32.totalorder 1, %s9
    %p175 = scmp.lt.s32.totalorder %s9, 9
    %p176 = pnand %p174, %p175
    %p177 = pneg %p176
    // Predicated region
    $region29: #{opt_regressor_forward.11} parent=5 // pred_check
      _
    $region30: #{opt_regressor_forward.11} parent=5 // pred_check_branch
      %179 = sbr.rel (%p176) target = $region32
    $region31: #{opt_regressor_forward.11} parent=5 // pred_region
      %s180 = ssub.s32 %s9, 1
      %p181 = scmp.lt.s32.totalorder %s18, 7
      %s182 = scalar_select %p181, %s18, 7
      %p183 = scmp.lt.s32.totalorder %s19, 0
      %s184 = scalar_select %p183, %s19, 0
      %s185 = sadd.s32 %s184, %s182
      %s186 = smul.addr %s185, 4
      %s187 = scalar_lea.vmem %s0, %s186
      %p188 = pneg %p49
      %p189 = pneg %p46
      %p190 = scmp.lt.s32.totalorder %s18, 7
      %s191 = scalar_select %p190, %s18, 7
      %s192 = sadd.s32 %s191, 8
      %s193 = smul.addr %s192, 4
      %s194 = scalar_lea.vmem %s1, %s193
      %p195 = pneg %p75
      %p196 = pneg %p72
      %p197 = scmp.lt.s32.totalorder %s18, 7
      %s198 = scalar_select %p197, %s18, 7
      %s199 = sadd.s32 %s198, 16
      %s200 = smul.addr %s199, 4
      %s201 = scalar_lea.vmem %s2, %s200
      %p202 = pneg %p101
      %p203 = pneg %p98
      %p204 = pneg %p129
      %p205 = pneg %p126
      %p206 = scmp.lt.s32.totalorder %s18, 7
      %s207 = scalar_select %p206, %s18, 7
      %p208 = scmp.lt.s32.totalorder %s19, 0
      %s209 = scalar_select %p208, %s19, 0
      %s210 = sadd.s32 %s209, %s207
      %s211 = smul.addr %s210, 4
      %s212 = scalar_lea.vmem %s3, %s211
      %p213 = scmp.lt.s32.totalorder %s18, 7
      %s214 = scalar_select %p213, %s18, 7
      %p215 = scmp.lt.s32.totalorder %s19, 0
      %s216 = scalar_select %p215, %s19, 0
      %s217 = sadd.s32 %s216, %s214
      %s218 = smul.addr %s217, 4
      %s219 = scalar_lea.vmem %s0, %s218
      %p220 = scmp.lt.s32.totalorder %s18, 7
      %s221 = scalar_select %p220, %s18, 7
      %s222 = sadd.s32 %s221, 8
      %s223 = smul.addr %s222, 4
      %s224 = scalar_lea.vmem %s1, %s223
      %p225 = scmp.lt.s32.totalorder %s18, 7
      %s226 = scalar_select %p225, %s18, 7
      %s227 = sadd.s32 %s226, 16
      %s228 = smul.addr %s227, 4
      %s229 = scalar_lea.vmem %s2, %s228
      %p230 = scmp.lt.s32.totalorder %s18, 7
      %s231 = scalar_select %p230, %s18, 7
      %p232 = scmp.lt.s32.totalorder %s19, 0
      %s233 = scalar_select %p232, %s19, 0
      %s234 = sadd.s32 %s233, %s231
      %s235 = smul.addr %s234, 4
      %s236 = scalar_lea.vmem %s3, %s235
      %v238 = vld [vmem:[%s219] sm:$0xf]
      // While loop
      $region33: #{opt_regressor_forward.11} parent=31 // loop_pre_header
        _
      $region34: #{opt_regressor_forward.11} parent=31 // loop_header
        %s240 = sphi 0, %s242
        %p241 = scmp.ge.s32.totalorder %s240, %s19
        %v245 = vphi -inf, %v308
        %v246 = vphi 0.0, %v319
        %v247 = vphi 0.0, %v369
      $region35: #{opt_regressor_forward.11} parent=31 // loop_header_branch
        %244 = sbr.rel (%p241) target = $region39
      $region36: #{opt_regressor_forward.11} parent=31 // loop_body
        %s248 = smul.u32 %s240, 8
        %s249 = sshra.s32 %s248, 3
        %s250 = sand.u32 %s248, 7
        %s251 = smul.addr %s249, 4
        %s252 = scalar_lea.vmem %s224, %s251
        %v253 = vld [vmem:[%s252] sm:$0xf]
        %s254 = smul.addr %s249, 4
        %s255 = scalar_lea.vmem %s229, %s254
        %v256 = vld [vmem:[%s255] sm:$0xf]
        %vm257 = vcmask 64512
        %v259 = vsel %vm257, %v238, 0
        %v262 = vsel %vm257, %v253, 0
        %264 = vmatprep.subr.bf16.mxu0 0
        %265 = vmatpush1.bf16.xpose.msra.mxu0 0
        %266 = vmatprep.subr.bf16.mxu0 0
        %267 = vmatpush1.bf16.xpose.msra.mxu0 0
        %268 = vmatprep.subr.bf16.mxu0 0
        %269 = vmatpush1.bf16.xpose.msra.mxu0 0
        %270 = vmatprep.subr.bf16.mxu0 0
        %271 = vmatpush1.bf16.xpose.msra.mxu0 0
        %272 = vmatprep.subr.bf16.mxu0 0
        %273 = vmatpush1.bf16.xpose.msra.mxu0 0
        %274 = vmatprep.subr.bf16.mxu0 0
        %275 = vmatpush1.bf16.xpose.msra.mxu0 0
        %276 = vmatprep.subr.bf16.mxu0 0
        %277 = vmatpush1.bf16.xpose.msra.mxu0 0
        %278 = vmatprep.subr.bf16.mxu0 0
        %279 = vmatpush1.bf16.xpose.msra.mxu0 %v262
        %280 = vmatprep.subr.bf16.mxu0 0
        %281 = vmatpush2.bf16.xpose.msra.mxu0 0
        %282 = vmatprep.subr.bf16.mxu0 0
        %283 = vmatpush2.bf16.xpose.msra.mxu0 0
        %284 = vmatprep.subr.bf16.mxu0 0
        %285 = vmatpush2.bf16.xpose.msra.mxu0 0
        %286 = vmatprep.subr.bf16.mxu0 0
        %287 = vmatpush2.bf16.xpose.msra.mxu0 0
        %288 = vmatprep.subr.bf16.mxu0 0
        %289 = vmatpush2.bf16.xpose.msra.mxu0 0
        %290 = vmatprep.subr.bf16.mxu0 0
        %291 = vmatpush2.bf16.xpose.msra.mxu0 0
        %292 = vmatprep.subr.bf16.mxu0 0
        %293 = vmatpush2.bf16.xpose.msra.mxu0 0
        %294 = vmatprep.subr.bf16.mxu0 0
        %295 = vmatpush2.bf16.xpose.msra.mxu0 0
        %296 = vmatprep.mubr.bf16.mxu0 0
        %297 = vmatmul.mubr.bf16.gmra.mxu0 %v259
        %v298 = vpop.f32.mrf.mxu0
        %v299 = vadd.f32 0.0, %v298
        %v300 = vpop.f32.mrf.mxu0
        %v301 = vpop.f32.mrf.mxu0
        %v302 = vpop.f32.mrf.mxu0
        %303 = vdwg.mxu0
        %v304 = vmul.f32 %v299, 0.35355338
        %v305 = vsel %vm257, %v304, -inf
        %306 = vmax.xlane.f32.xlu0 %v305
        %v307 = vpop.xlane.xlu0 %306
        %v308 = vmax.f32 %v245, %v307
        %v309 = vsub.f32 %v245, %v308
        %v310 = vmul.f32 %v309, 1.442695
        %v311 = vpow.pop %v310
        %v312 = vsub.f32 %v304, %v308
        %v313 = vmul.f32 %v312, 1.442695
        %v314 = vpow.pop %v313
        %v315 = vmul.f32 %v311, %v246
        %v316 = vsel %vm257, %v314, 0.0
        %317 = vadd.xlane.f32.xlu0 %v316
        %v318 = vpop.xlane.xlu0 %317
        %v319 = vadd.f32 %v315, %v318
        %v320 = vmul.f32 %v311, %v247
        %v321 = vpack.c.bf16 %v314, %v314
        %v323 = vsel %vm257, %v321, 0
        %vm325 = vcmask 1043456
        %v327 = vsel %vm325, %v256, 0
        %329 = vmatprep.subr.bf16.mxu0 0
        %330 = vmatpush1.bf16.msra.mxu0 0
        %331 = vmatprep.subr.bf16.mxu0 0
        %332 = vmatpush1.bf16.msra.mxu0 0
        %333 = vmatprep.subr.bf16.mxu0 0
        %334 = vmatpush1.bf16.msra.mxu0 0
        %335 = vmatprep.subr.bf16.mxu0 0
        %336 = vmatpush1.bf16.msra.mxu0 0
        %337 = vmatprep.subr.bf16.mxu0 0
        %338 = vmatpush1.bf16.msra.mxu0 0
        %339 = vmatprep.subr.bf16.mxu0 0
        %340 = vmatpush1.bf16.msra.mxu0 0
        %341 = vmatprep.subr.bf16.mxu0 0
        %342 = vmatpush1.bf16.msra.mxu0 0
        %343 = vmatprep.subr.bf16.mxu0 0
        %344 = vmatpush1.bf16.msra.mxu0 %v327
        %345 = vmatprep.subr.bf16.mxu0 0
        %346 = vmatpush2.bf16.msra.mxu0 0
        %347 = vmatprep.subr.bf16.mxu0 0
        %348 = vmatpush2.bf16.msra.mxu0 0
        %349 = vmatprep.subr.bf16.mxu0 0
        %350 = vmatpush2.bf16.msra.mxu0 0
        %351 = vmatprep.subr.bf16.mxu0 0
        %352 = vmatpush2.bf16.msra.mxu0 0
        %353 = vmatprep.subr.bf16.mxu0 0
        %354 = vmatpush2.bf16.msra.mxu0 0
        %355 = vmatprep.subr.bf16.mxu0 0
        %356 = vmatpush2.bf16.msra.mxu0 0
        %357 = vmatprep.subr.bf16.mxu0 0
        %358 = vmatpush2.bf16.msra.mxu0 0
        %359 = vmatprep.subr.bf16.mxu0 0
        %360 = vmatpush2.bf16.msra.mxu0 0
        %361 = vmatprep.mubr.bf16.mxu0 0
        %362 = vmatmul.mubr.bf16.gmra.mxu0 %v323
        %v363 = vpop.f32.mrf.mxu0
        %v364 = vadd.f32 0.0, %v363
        %v365 = vpop.f32.mrf.mxu0
        %v366 = vpop.f32.mrf.mxu0
        %v367 = vpop.f32.mrf.mxu0
        %368 = vdwg.mxu0
        %v369 = vadd.f32 %v320, %v364
      $region37: #{opt_regressor_forward.11} parent=31 // loop_footer
        %s242 = sadd.s32 %s240, 1
      $region38: #{opt_regressor_forward.11} parent=31 // loop_footer_branch
        %239 = sbr.rel target = $region34
      $region39: #{opt_regressor_forward.11} parent=31 // loop_exit
        _
      %s370 = smul.u32 %s19, 8
      %s371 = sshra.s32 %s370, 3
      %s372 = sand.u32 %s370, 7
      %s373 = smul.addr %s371, 4
      %s374 = scalar_lea.vmem %s224, %s373
      %v375 = vld [vmem:[%s374] sm:$0xf]
      %s376 = smul.addr %s371, 4
      %s377 = scalar_lea.vmem %s229, %s376
      %v378 = vld [vmem:[%s377] sm:$0xf]
      %vm379 = vcmask 64512
      %v381 = vsel %vm379, %v238, 0
      %v384 = vsel %vm379, %v375, 0
      %386 = vmatprep.subr.bf16.mxu0 0
      %387 = vmatpush1.bf16.xpose.msra.mxu0 0
      %388 = vmatprep.subr.bf16.mxu0 0
      %389 = vmatpush1.bf16.xpose.msra.mxu0 0
      %390 = vmatprep.subr.bf16.mxu0 0
      %391 = vmatpush1.bf16.xpose.msra.mxu0 0
      %392 = vmatprep.subr.bf16.mxu0 0
      %393 = vmatpush1.bf16.xpose.msra.mxu0 0
      %394 = vmatprep.subr.bf16.mxu0 0
      %395 = vmatpush1.bf16.xpose.msra.mxu0 0
      %396 = vmatprep.subr.bf16.mxu0 0
      %397 = vmatpush1.bf16.xpose.msra.mxu0 0
      %398 = vmatprep.subr.bf16.mxu0 0
      %399 = vmatpush1.bf16.xpose.msra.mxu0 0
      %400 = vmatprep.subr.bf16.mxu0 0
      %401 = vmatpush1.bf16.xpose.msra.mxu0 %v384
      %402 = vmatprep.subr.bf16.mxu0 0
      %403 = vmatpush2.bf16.xpose.msra.mxu0 0
      %404 = vmatprep.subr.bf16.mxu0 0
      %405 = vmatpush2.bf16.xpose.msra.mxu0 0
      %406 = vmatprep.subr.bf16.mxu0 0
      %407 = vmatpush2.bf16.xpose.msra.mxu0 0
      %408 = vmatprep.subr.bf16.mxu0 0
      %409 = vmatpush2.bf16.xpose.msra.mxu0 0
      %410 = vmatprep.subr.bf16.mxu0 0
      %411 = vmatpush2.bf16.xpose.msra.mxu0 0
      %412 = vmatprep.subr.bf16.mxu0 0
      %413 = vmatpush2.bf16.xpose.msra.mxu0 0
      %414 = vmatprep.subr.bf16.mxu0 0
      %415 = vmatpush2.bf16.xpose.msra.mxu0 0
      %416 = vmatprep.subr.bf16.mxu0 0
      %417 = vmatpush2.bf16.xpose.msra.mxu0 0
      %418 = vmatprep.mubr.bf16.mxu0 0
      %419 = vmatmul.mubr.bf16.gmra.mxu0 %v381
      %v420 = vpop.f32.mrf.mxu0
      %v421 = vadd.f32 0.0, %v420
      %v422 = vpop.f32.mrf.mxu0
      %v423 = vpop.f32.mrf.mxu0
      %v424 = vpop.f32.mrf.mxu0
      %425 = vdwg.mxu0
      %v426 = vmul.f32 %v421, 0.35355338
      %v427 = vlaneseq
      %v428 = vshrl.u32 %v427, 7
      %v429 = vlaneseq
      %v430 = vand.u32 %v429, 127
      %vm431 = vcmp.ge.s32.totalorder %v428, %v430
      %v432 = vsel %vm431, %v426, -1e+30
      %v433 = vsel %vm379, %v432, -inf
      %434 = vmax.xlane.f32.xlu0 %v433
      %v435 = vpop.xlane.xlu0 %434
      %v436 = vmax.f32 %v245, %v435
      %v437 = vsub.f32 %v245, %v436
      %v438 = vmul.f32 %v437, 1.442695
      %v439 = vpow.pop %v438
      %v440 = vsub.f32 %v432, %v436
      %v441 = vmul.f32 %v440, 1.442695
      %v442 = vpow.pop %v441
      %v443 = vmul.f32 %v439, %v246
      %v444 = vsel %vm379, %v442, 0.0
      %445 = vadd.xlane.f32.xlu0 %v444
      %v446 = vpop.xlane.xlu0 %445
      %v447 = vadd.f32 %v443, %v446
      %v448 = vmul.f32 %v439, %v247
      %v449 = vpack.c.bf16 %v442, %v442
      %v451 = vsel %vm379, %v449, 0
      %vm453 = vcmask 1043456
      %v455 = vsel %vm453, %v378, 0
      %457 = vmatprep.subr.bf16.mxu0 0
      %458 = vmatpush1.bf16.msra.mxu0 0
      %459 = vmatprep.subr.bf16.mxu0 0
      %460 = vmatpush1.bf16.msra.mxu0 0
      %461 = vmatprep.subr.bf16.mxu0 0
      %462 = vmatpush1.bf16.msra.mxu0 0
      %463 = vmatprep.subr.bf16.mxu0 0
      %464 = vmatpush1.bf16.msra.mxu0 0
      %465 = vmatprep.subr.bf16.mxu0 0
      %466 = vmatpush1.bf16.msra.mxu0 0
      %467 = vmatprep.subr.bf16.mxu0 0
      %468 = vmatpush1.bf16.msra.mxu0 0
      %469 = vmatprep.subr.bf16.mxu0 0
      %470 = vmatpush1.bf16.msra.mxu0 0
      %471 = vmatprep.subr.bf16.mxu0 0
      %472 = vmatpush1.bf16.msra.mxu0 %v455
      %473 = vmatprep.subr.bf16.mxu0 0
      %474 = vmatpush2.bf16.msra.mxu0 0
      %475 = vmatprep.subr.bf16.mxu0 0
      %476 = vmatpush2.bf16.msra.mxu0 0
      %477 = vmatprep.subr.bf16.mxu0 0
      %478 = vmatpush2.bf16.msra.mxu0 0
      %479 = vmatprep.subr.bf16.mxu0 0
      %480 = vmatpush2.bf16.msra.mxu0 0
      %481 = vmatprep.subr.bf16.mxu0 0
      %482 = vmatpush2.bf16.msra.mxu0 0
      %483 = vmatprep.subr.bf16.mxu0 0
      %484 = vmatpush2.bf16.msra.mxu0 0
      %485 = vmatprep.subr.bf16.mxu0 0
      %486 = vmatpush2.bf16.msra.mxu0 0
      %487 = vmatprep.subr.bf16.mxu0 0
      %488 = vmatpush2.bf16.msra.mxu0 0
      %489 = vmatprep.mubr.bf16.mxu0 0
      %490 = vmatmul.mubr.bf16.gmra.mxu0 %v451
      %v491 = vpop.f32.mrf.mxu0
      %v492 = vadd.f32 0.0, %v491
      %v493 = vpop.f32.mrf.mxu0
      %v494 = vpop.f32.mrf.mxu0
      %v495 = vpop.f32.mrf.mxu0
      %496 = vdwg.mxu0
      %v497 = vadd.f32 %v448, %v492
      %v498 = vrcp.pop %v447
      %v499 = vmul.f32 %v497, %v498
      %v500 = vpack.c.bf16 %v499, %v499
      %vm501 = vcmask 60416
      %502 = vst.msk [vmem:[%s236] sm:$0xf] %vm501, %v500
      %p503 = scmp.lt.s32.totalorder %s18, 7
      %s504 = scalar_select %p503, %s18, 7
      %p505 = scmp.lt.s32.totalorder %s19, 0
      %s506 = scalar_select %p505, %s19, 0
      %s507 = sadd.s32 %s506, %s504
      %s508 = smul.addr %s507, 4
      %s509 = scalar_lea.vmem %s3, %s508
      // Predicated region
      $region40: #{opt_regressor_forward.11} parent=31 // pred_check
        %p510 = pneg %p126
      $region41: #{opt_regressor_forward.11} parent=31 // pred_check_branch
        %512 = sbr.rel (%p510) target = $region43
      $region42: #{opt_regressor_forward.11} parent=31 // pred_region
        _
      $region43: #{opt_regressor_forward.11} parent=31 // pred_fallthru
        _
    $region32: #{opt_regressor_forward.11} parent=5 // pred_fallthru
      _
    %p513 = scmp.le.s32.totalorder 2, %s9
    // Predicated region
    $region44: #{opt_regressor_forward.11} parent=5 // pred_check
      %p514 = pneg %p513
    $region45: #{opt_regressor_forward.11} parent=5 // pred_check_branch
      %516 = sbr.rel (%p514) target = $region47
    $region46: #{opt_regressor_forward.11} parent=5 // pred_region
      %s517 = ssub.s32 %s9, 2
      // Predicated region
      $region48: #{opt_regressor_forward.11} parent=46 // pred_check
        %p518 = pneg %p132
      $region49: #{opt_regressor_forward.11} parent=46 // pred_check_branch
        %520 = sbr.rel (%p518) target = $region51
      $region50: #{opt_regressor_forward.11} parent=46 // pred_region
        %p521 = scmp.lt.s32.totalorder %s20, 7
        %s522 = scalar_select %p521, %s20, 7
        %p523 = scmp.lt.s32.totalorder %s21, 0
        %s524 = scalar_select %p523, %s21, 0
        %s525 = sadd.s32 %s524, %s522
        %s526 = smul.addr %s525, 4
        %s527 = scalar_lea.vmem %s3, %s526
      $region51: #{opt_regressor_forward.11} parent=46 // pred_fallthru
        _
    $region47: #{opt_regressor_forward.11} parent=5 // pred_fallthru
      _
  $region6: #{opt_regressor_forward.11} parent=0 // loop_footer
    %s13 = sadd.s32 1, %s9
  $region7: #{opt_regressor_forward.11} parent=0 // loop_footer_branch
    %8 = sbr.rel target = $region3
  $region8: #{opt_regressor_forward.11} parent=0 // loop_exit
    _

// kernel: opt_regressor_forward.13
$region0: #{opt_regressor_forward.13}
  #allocation0 [shape = 'u32[]', space=smem, size = 0x4, offset = 0x4, fixed_abs, tag = 'smem constant byte address 0x4 - core index']
  #allocation1 [shape = 'u32[144,128]{1,0:T(1,128)}', space=vmem, size = 0x12000, scoped, tag = 'internal scratch']
  #allocation2 [shape = 'bf16[16,32]{1,0:T(8,128)(2,1)}', space=vmem, size = 0x1000, scoped, tag = 'scratch operand']
  %s0 = inlined_call_operand.vmem [shape: bf16[16,32], index: 0, kind: input, shape index: {}]
  %s1 = inlined_call_operand.vmem [shape: f32[1,32], index: 1, kind: input, shape index: {}]
  %s2 = inlined_call_operand.vmem [shape: f32[1,32], index: 2, kind: input, shape index: {}]
  %s3 = inlined_call_operand.vmem [shape: bf16[32,64], index: 3, kind: input, shape index: {}]
  %s4 = inlined_call_operand.vmem [shape: f32[1,64], index: 4, kind: input, shape index: {}]
  %s5 = inlined_call_operand.vmem [shape: bf16[16,64], index: 5, kind: output, shape index: {}]
  %s6 = sld [smem:[#allocation0]]
  $region34: #{opt_regressor_forward.13} parent=0
    _
  %s8 = ssub.s32 1, %s6
  %s9 = scalar_select 0, %s8, %s6
  // Predicated region
  $region2: #{opt_regressor_forward.13} parent=0 // pred_check
    _
  $region3: #{opt_regressor_forward.13} parent=0 // pred_check_branch
    %11 = sbr.rel (0) target = $region5
  $region4: #{opt_regressor_forward.13} parent=0 // pred_region
    _
  $region5: #{opt_regressor_forward.13} parent=0 // pred_fallthru
    _
  // Predicated region
  $region6: #{opt_regressor_forward.13} parent=0 // pred_check
    _
  $region7: #{opt_regressor_forward.13} parent=0 // pred_check_branch
    %13 = sbr.rel (0) target = $region9
  $region8: #{opt_regressor_forward.13} parent=0 // pred_region
    _
  $region9: #{opt_regressor_forward.13} parent=0 // pred_fallthru
    _
  // Predicated region
  $region10: #{opt_regressor_forward.13} parent=0 // pred_check
    _
  $region11: #{opt_regressor_forward.13} parent=0 // pred_check_branch
    %15 = sbr.rel (0) target = $region13
  $region12: #{opt_regressor_forward.13} parent=0 // pred_region
    _
  $region13: #{opt_regressor_forward.13} parent=0 // pred_fallthru
    _
  // Predicated region
  $region14: #{opt_regressor_forward.13} parent=0 // pred_check
    _
  $region15: #{opt_regressor_forward.13} parent=0 // pred_check_branch
    %17 = sbr.rel (0) target = $region17
  $region16: #{opt_regressor_forward.13} parent=0 // pred_region
    _
  $region17: #{opt_regressor_forward.13} parent=0 // pred_fallthru
    _
  // Predicated region
  $region18: #{opt_regressor_forward.13} parent=0 // pred_check
    _
  $region19: #{opt_regressor_forward.13} parent=0 // pred_check_branch
    %19 = sbr.rel (0) target = $region21
  $region20: #{opt_regressor_forward.13} parent=0 // pred_region
    _
  $region21: #{opt_regressor_forward.13} parent=0 // pred_fallthru
    _
  %p21 = scmp.eq.s32.totalorder 0, 0
  // Predicated region
  $region22: #{opt_regressor_forward.13} parent=0 // pred_check
    %p22 = pneg %p21
  $region23: #{opt_regressor_forward.13} parent=0 // pred_check_branch
    %24 = sbr.rel (%p22) target = $region25
  $region24: #{opt_regressor_forward.13} parent=0 // pred_region
    %v25 = vld [vmem:[%s0] sm:$0xf]
    %v26 = vld [vmem:[%s0 + $0x4] sm:$0xf]
    %v27 = vunpack.c.l.bf16 %v25
    %v28 = vunpack.c.l.bf16 %v26
    %vm29 = vcmask 261120
    %v30 = vsel %vm29, %v27, 0.0
    %31 = vadd.xlane.f32.xlu0 %v30
    %v32 = vpop.xlane.xlu0 %31
    %v33 = vsel %vm29, %v28, 0.0
    %34 = vadd.xlane.f32.xlu0 %v33
    %v35 = vpop.xlane.xlu0 %34
    %v36 = vrcp.pop 32.0
    %v37 = vmul.f32 %v32, %v36
    %v38 = vmul.f32 %v35, %v36
    %v39 = vsub.f32 %v27, %v37
    %v40 = vsub.f32 %v28, %v38
    %v41 = vmul.f32 %v39, %v39
    %v42 = vmul.f32 %v40, %v40
    %v43 = vsel %vm29, %v41, 0.0
    %44 = vadd.xlane.f32.xlu0 %v43
    %v45 = vpop.xlane.xlu0 %44
    %v46 = vsel %vm29, %v42, 0.0
    %47 = vadd.xlane.f32.xlu0 %v46
    %v48 = vpop.xlane.xlu0 %47
    %v49 = vmul.f32 %v45, %v36
    %v50 = vmul.f32 %v48, %v36
    %v51 = vadd.f32 %v49, 1e-05
    %v52 = vadd.f32 %v50, 1e-05
    %v53 = vrsqrt.pop %v51
    %v54 = vrsqrt.pop %v52
    %v55 = vmul.f32 %v39, %v53
    %v56 = vmul.f32 %v40, %v54
    %v57 = vld [vmem:[%s1] sm:$0x1]
    %v59 = vlaneseq
    %v60 = vshrl.u32 %v59, 7
    %v61 = vsub.s32 0, %v60
    %v62 = vrot.slane %v57, %v61
    %v64 = vmul.f32 %v55, %v62
    %v65 = vmul.f32 %v56, %v62
    %v66 = vld [vmem:[%s2] sm:$0x1]
    %v68 = vlaneseq
    %v69 = vshrl.u32 %v68, 7
    %v70 = vsub.s32 0, %v69
    %v71 = vrot.slane %v66, %v70
    %v73 = vadd.f32 %v64, %v71
    %v74 = vadd.f32 %v65, %v71
    %v75 = vpack.c.bf16 %v74, %v73
    %v77 = vunpack.c.l.b16 %v75
    %v78 = vunpack.c.h.b16 %v75
    %v79 = vpack.c.b16 %v77, %v77
    %v80 = vpack.c.b16 %v78, %v78
    %vm83 = vcmask 257024
    %84 = vst.msk [vmem:[#allocation2] sm:$0xf] %vm83, %v79
    %85 = vst.msk [vmem:[#allocation2 + $0x4] sm:$0xf] %vm83, %v80
  $region25: #{opt_regressor_forward.13} parent=0 // pred_fallthru
    _
  %v86 = vld [vmem:[#allocation2] sm:$0xf]
  %v87 = vld [vmem:[#allocation2 + $0x4] sm:$0xf]
  %v88 = vld [vmem:[%s3] sm:$0xf]
  %v89 = vld [vmem:[%s3 + $0x4] sm:$0xf]
  %v90 = vld [vmem:[%s3 + $0x8] sm:$0xf]
  %v91 = vld [vmem:[%s3 + $0xc] sm:$0xf]
  %v92 = vld [vmem:[%s4] sm:$0x1]
  %v94 = vlaneseq
  %v95 = vshrl.u32 %v94, 7
  %v96 = vsub.s32 0, %v95
  %v97 = vrot.slane %v92, %v96
  %v101 = vunpack.c.l.b16 %v86
  %v102 = vunpack.c.l.b16 %v87
  %v103 = vpack.c.b16 %v102, %v101
  %v108 = vunpack.c.l.b16 %v88
  %v109 = vunpack.c.l.b16 %v89
  %v110 = vunpack.c.l.b16 %v90
  %v111 = vunpack.c.l.b16 %v91
  %v112 = vpack.c.b16 %v109, %v108
  %v113 = vpack.c.b16 %v111, %v110
  %vm116 = vcmask 261120
  %v118 = vsel %vm116, %v103, 0
  %120 = vmatprep.subr.bf16.mxu0 0
  %121 = vmatpush1.bf16.msra.mxu0 0
  %122 = vmatprep.subr.bf16.mxu0 0
  %123 = vmatpush1.bf16.msra.mxu0 0
  %124 = vmatprep.subr.bf16.mxu0 0
  %125 = vmatpush1.bf16.msra.mxu0 0
  %126 = vmatprep.subr.bf16.mxu0 0
  %127 = vmatpush1.bf16.msra.mxu0 0
  %128 = vmatprep.subr.bf16.mxu0 0
  %129 = vmatpush1.bf16.msra.mxu0 0
  %130 = vmatprep.subr.bf16.mxu0 0
  %131 = vmatpush1.bf16.msra.mxu0 0
  %132 = vmatprep.subr.bf16.mxu0 0
  %133 = vmatpush1.bf16.msra.mxu0 %v113
  %134 = vmatprep.subr.bf16.mxu0 0
  %135 = vmatpush1.bf16.msra.mxu0 %v112
  %136 = vmatprep.subr.bf16.mxu0 0
  %137 = vmatpush2.bf16.msra.mxu0 0
  %138 = vmatprep.subr.bf16.mxu0 0
  %139 = vmatpush2.bf16.msra.mxu0 0
  %140 = vmatprep.subr.bf16.mxu0 0
  %141 = vmatpush2.bf16.msra.mxu0 0
  %142 = vmatprep.subr.bf16.mxu0 0
  %143 = vmatpush2.bf16.msra.mxu0 0
  %144 = vmatprep.subr.bf16.mxu0 0
  %145 = vmatpush2.bf16.msra.mxu0 0
  %146 = vmatprep.subr.bf16.mxu0 0
  %147 = vmatpush2.bf16.msra.mxu0 0
  %148 = vmatprep.subr.bf16.mxu0 0
  %149 = vmatpush2.bf16.msra.mxu0 0
  %150 = vmatprep.subr.bf16.mxu0 0
  %151 = vmatpush2.bf16.msra.mxu0 0
  %152 = vmatprep.mubr.bf16.mxu0 0
  %153 = vmatmul.mubr.bf16.gmra.mxu0 %v118
  %v154 = vpop.f32.mrf.mxu0
  %v155 = vadd.f32 %v97, %v154
  %v156 = vpop.f32.mrf.mxu0
  %v157 = vpop.f32.mrf.mxu0
  %v158 = vadd.f32 %v97, %v157
  %v159 = vpop.f32.mrf.mxu0
  %160 = vdwg.mxu0
  %v161 = vmax.f32 %v155, 0.0
  %v162 = vmax.f32 %v158, 0.0
  %v163 = vpack.c.bf16 %v162, %v161
  %v165 = vunpack.c.l.b16 %v163
  %v166 = vunpack.c.h.b16 %v163
  %v167 = vpack.c.b16 %v165, %v165
  %v168 = vpack.c.b16 %v166, %v166
  %vm171 = vcmask 519168
  %172 = vst.msk [vmem:[%s5] sm:$0xf] %vm171, %v167
  %173 = vst.msk [vmem:[%s5 + $0x4] sm:$0xf] %vm171, %v168
  // Predicated region
  $region26: #{opt_regressor_forward.13} parent=0 // pred_check
    _
  $region27: #{opt_regressor_forward.13} parent=0 // pred_check_branch
    %175 = sbr.rel (0) target = $region29
  $region28: #{opt_regressor_forward.13} parent=0 // pred_region
    _
  $region29: #{opt_regressor_forward.13} parent=0 // pred_fallthru
    _
  // Predicated region
  $region30: #{opt_regressor_forward.13} parent=0 // pred_check
    _
  $region31: #{opt_regressor_forward.13} parent=0 // pred_check_branch
    %177 = sbr.rel (0) target = $region33
  $region32: #{opt_regressor_forward.13} parent=0 // pred_region
    _
  $region33: #{opt_regressor_forward.13} parent=0 // pred_fallthru
    _

// kernel: opt_regressor_forward.12
$region0: #{opt_regressor_forward.12}
  #allocation0 [shape = 'u32[]', space=smem, size = 0x4, offset = 0x4, fixed_abs, tag = 'smem constant byte address 0x4 - core index']
  #allocation1 [shape = 'u32[144,128]{1,0:T(1,128)}', space=vmem, size = 0x12000, scoped, tag = 'internal scratch']
  #allocation2 [shape = 'f32[16,32]{1,0:T(8,128)}', space=vmem, size = 0x2000, scoped, tag = 'scratch operand']
  %s0 = inlined_call_operand.vmem [shape: bf16[16,32], index: 0, kind: input, shape index: {}]
  %s1 = inlined_call_operand.vmem [shape: bf16[32,32], index: 1, kind: input, shape index: {}]
  %s2 = inlined_call_operand.vmem [shape: f32[1,32], index: 2, kind: input, shape index: {}]
  %s3 = inlined_call_operand.vmem [shape: bf16[16,32], index: 3, kind: input, shape index: {}]
  %s4 = inlined_call_operand.vmem [shape: bf16[16,32], index: 4, kind: output, shape index: {}]
  %s5 = sld [smem:[#allocation0]]
  $region34: #{opt_regressor_forward.12} parent=0
    _
  %s7 = ssub.s32 1, %s5
  %s8 = scalar_select 0, %s7, %s5
  // Predicated region
  $region2: #{opt_regressor_forward.12} parent=0 // pred_check
    _
  $region3: #{opt_regressor_forward.12} parent=0 // pred_check_branch
    %10 = sbr.rel (0) target = $region5
  $region4: #{opt_regressor_forward.12} parent=0 // pred_region
    _
  $region5: #{opt_regressor_forward.12} parent=0 // pred_fallthru
    _
  // Predicated region
  $region6: #{opt_regressor_forward.12} parent=0 // pred_check
    _
  $region7: #{opt_regressor_forward.12} parent=0 // pred_check_branch
    %12 = sbr.rel (0) target = $region9
  $region8: #{opt_regressor_forward.12} parent=0 // pred_region
    _
  $region9: #{opt_regressor_forward.12} parent=0 // pred_fallthru
    _
  // Predicated region
  $region10: #{opt_regressor_forward.12} parent=0 // pred_check
    _
  $region11: #{opt_regressor_forward.12} parent=0 // pred_check_branch
    %14 = sbr.rel (0) target = $region13
  $region12: #{opt_regressor_forward.12} parent=0 // pred_region
    _
  $region13: #{opt_regressor_forward.12} parent=0 // pred_fallthru
    _
  // Predicated region
  $region14: #{opt_regressor_forward.12} parent=0 // pred_check
    _
  $region15: #{opt_regressor_forward.12} parent=0 // pred_check_branch
    %16 = sbr.rel (0) target = $region17
  $region16: #{opt_regressor_forward.12} parent=0 // pred_region
    _
  $region17: #{opt_regressor_forward.12} parent=0 // pred_fallthru
    _
  %p18 = scmp.eq.s32.totalorder 0, 0
  // Predicated region
  $region18: #{opt_regressor_forward.12} parent=0 // pred_check
    %p19 = pneg %p18
  $region19: #{opt_regressor_forward.12} parent=0 // pred_check_branch
    %21 = sbr.rel (%p19) target = $region21
  $region20: #{opt_regressor_forward.12} parent=0 // pred_region
    %vm22 = vcmask 261120
    %23 = vst.msk [vmem:[#allocation2] sm:$0xff] %vm22, 0.0
    %24 = vst.msk [vmem:[#allocation2 + $0x8] sm:$0xff] %vm22, 0.0
  $region21: #{opt_regressor_forward.12} parent=0 // pred_fallthru
    _
  %v25 = vld [vmem:[#allocation2] sm:$0xff]
  %v26 = vld [vmem:[#allocation2 + $0x8] sm:$0xff]
  %v27 = vld [vmem:[%s0] sm:$0xf]
  %v28 = vld [vmem:[%s0 + $0x4] sm:$0xf]
  %v29 = vld [vmem:[%s1] sm:$0xf]
  %v30 = vld [vmem:[%s1 + $0x4] sm:$0xf]
  %v31 = vld [vmem:[%s1 + $0x8] sm:$0xf]
  %v32 = vld [vmem:[%s1 + $0xc] sm:$0xf]
  %v35 = vunpack.c.l.b16 %v27
  %v36 = vunpack.c.l.b16 %v28
  %v37 = vpack.c.b16 %v36, %v35
  %v42 = vunpack.c.l.b16 %v29
  %v43 = vunpack.c.l.b16 %v30
  %v44 = vunpack.c.l.b16 %v31
  %v45 = vunpack.c.l.b16 %v32
  %v46 = vpack.c.b16 %v43, %v42
  %v47 = vpack.c.b16 %v45, %v44
  %vm50 = vcmask 261120
  %v52 = vsel %vm50, %v37, 0
  %54 = vmatprep.subr.bf16.mxu0 0
  %55 = vmatpush1.bf16.msra.mxu0 0
  %56 = vmatprep.subr.bf16.mxu0 0
  %57 = vmatpush1.bf16.msra.mxu0 0
  %58 = vmatprep.subr.bf16.mxu0 0
  %59 = vmatpush1.bf16.msra.mxu0 0
  %60 = vmatprep.subr.bf16.mxu0 0
  %61 = vmatpush1.bf16.msra.mxu0 0
  %62 = vmatprep.subr.bf16.mxu0 0
  %63 = vmatpush1.bf16.msra.mxu0 0
  %64 = vmatprep.subr.bf16.mxu0 0
  %65 = vmatpush1.bf16.msra.mxu0 0
  %66 = vmatprep.subr.bf16.mxu0 0
  %67 = vmatpush1.bf16.msra.mxu0 %v47
  %68 = vmatprep.subr.bf16.mxu0 0
  %69 = vmatpush1.bf16.msra.mxu0 %v46
  %70 = vmatprep.subr.bf16.mxu0 0
  %71 = vmatpush2.bf16.msra.mxu0 0
  %72 = vmatprep.subr.bf16.mxu0 0
  %73 = vmatpush2.bf16.msra.mxu0 0
  %74 = vmatprep.subr.bf16.mxu0 0
  %75 = vmatpush2.bf16.msra.mxu0 0
  %76 = vmatprep.subr.bf16.mxu0 0
  %77 = vmatpush2.bf16.msra.mxu0 0
  %78 = vmatprep.subr.bf16.mxu0 0
  %79 = vmatpush2.bf16.msra.mxu0 0
  %80 = vmatprep.subr.bf16.mxu0 0
  %81 = vmatpush2.bf16.msra.mxu0 0
  %82 = vmatprep.subr.bf16.mxu0 0
  %83 = vmatpush2.bf16.msra.mxu0 0
  %84 = vmatprep.subr.bf16.mxu0 0
  %85 = vmatpush2.bf16.msra.mxu0 0
  %86 = vmatprep.mubr.bf16.mxu0 0
  %87 = vmatmul.mubr.bf16.gmra.mxu0 %v52
  %v88 = vpop.f32.mrf.mxu0
  %v89 = vadd.f32 0.0, %v88
  %v90 = vpop.f32.mrf.mxu0
  %v91 = vpop.f32.mrf.mxu0
  %v92 = vadd.f32 0.0, %v91
  %v93 = vpop.f32.mrf.mxu0
  %94 = vdwg.mxu0
  %v95 = vadd.f32 %v25, %v89
  %v96 = vadd.f32 %v26, %v92
  %97 = vst.msk [vmem:[#allocation2] sm:$0xff] %vm50, %v95
  %98 = vst.msk [vmem:[#allocation2 + $0x8] sm:$0xff] %vm50, %v96
  // Predicated region
  $region22: #{opt_regressor_forward.12} parent=0 // pred_check
    %p99 = pneg %p18
  $region23: #{opt_regressor_forward.12} parent=0 // pred_check_branch
    %101 = sbr.rel (%p99) target = $region25
  $region24: #{opt_regressor_forward.12} parent=0 // pred_region
    %v102 = vld [vmem:[#allocation2] sm:$0xff]
    %v103 = vld [vmem:[#allocation2 + $0x8] sm:$0xff]
    %v104 = vld [vmem:[%s2] sm:$0x1]
    %v106 = vlaneseq
    %v107 = vshrl.u32 %v106, 7
    %v108 = vsub.s32 0, %v107
    %v109 = vrot.slane %v104, %v108
    %v111 = vadd.f32 %v102, %v109
    %v112 = vadd.f32 %v103, %v109
    %v113 = vld [vmem:[%s3] sm:$0xf]
    %v114 = vld [vmem:[%s3 + $0x4] sm:$0xf]
    %v115 = vunpack.c.l.bf16 %v113
    %v116 = vunpack.c.l.bf16 %v114
    %v117 = vadd.f32 %v111, %v115
    %v118 = vadd.f32 %v112, %v116
    %v119 = vpack.c.bf16 %v118, %v117
    %v121 = vunpack.c.l.b16 %v119
    %v122 = vunpack.c.h.b16 %v119
    %v123 = vpack.c.b16 %v121, %v121
    %v124 = vpack.c.b16 %v122, %v122
    %vm127 = vcmask 257024
    %128 = vst.msk [vmem:[%s4] sm:$0xf] %vm127, %v123
    %129 = vst.msk [vmem:[%s4 + $0x4] sm:$0xf] %vm127, %v124
  $region25: #{opt_regressor_forward.12} parent=0 // pred_fallthru
    _
  // Predicated region
  $region26: #{opt_regressor_forward.12} parent=0 // pred_check
    _
  $region27: #{opt_regressor_forward.12} parent=0 // pred_check_branch
    %131 = sbr.rel (0) target = $region29
  $region28: #{opt_regressor_forward.12} parent=0 // pred_region
    _
  $region29: #{opt_regressor_forward.12} parent=0 // pred_fallthru
    _
  // Predicated region
  $region30: #{opt_regressor_forward.12} parent=0 // pred_check
    _
  $region31: #{opt_regressor_forward.12} parent=0 // pred_check_branch
    %133 = sbr.rel (0) target = $region33
  $region32: #{opt_regressor_forward.12} parent=0 // pred_region
    _
  $region33: #{opt_regressor_forward.12} parent=0 // pred_fallthru
    _

// kernel: opt_regressor_forward.14
$region0: #{opt_regressor_forward.14}
  #allocation0 [shape = 'u32[]', space=smem, size = 0x4, offset = 0x4, fixed_abs, tag = 'smem constant byte address 0x4 - core index']
  #allocation1 [shape = 'u32[144,128]{1,0:T(1,128)}', space=vmem, size = 0x12000, scoped, tag = 'internal scratch']
  #allocation2 [shape = 'f32[16,32]{1,0:T(8,128)}', space=vmem, size = 0x2000, scoped, tag = 'scratch operand']
  %s0 = inlined_call_operand.vmem [shape: bf16[16,64], index: 0, kind: input, shape index: {}]
  %s1 = inlined_call_operand.vmem [shape: bf16[64,32], index: 1, kind: input, shape index: {}]
  %s2 = inlined_call_operand.vmem [shape: f32[1,32], index: 2, kind: input, shape index: {}]
  %s3 = inlined_call_operand.vmem [shape: bf16[16,32], index: 3, kind: input, shape index: {}]
  %s4 = inlined_call_operand.vmem [shape: bf16[16,32], index: 4, kind: output, shape index: {}]
  %s5 = sld [smem:[#allocation0]]
  $region34: #{opt_regressor_forward.14} parent=0
    _
  %s7 = ssub.s32 1, %s5
  %s8 = scalar_select 0, %s7, %s5
  // Predicated region
  $region2: #{opt_regressor_forward.14} parent=0 // pred_check
    _
  $region3: #{opt_regressor_forward.14} parent=0 // pred_check_branch
    %10 = sbr.rel (0) target = $region5
  $region4: #{opt_regressor_forward.14} parent=0 // pred_region
    _
  $region5: #{opt_regressor_forward.14} parent=0 // pred_fallthru
    _
  // Predicated region
  $region6: #{opt_regressor_forward.14} parent=0 // pred_check
    _
  $region7: #{opt_regressor_forward.14} parent=0 // pred_check_branch
    %12 = sbr.rel (0) target = $region9
  $region8: #{opt_regressor_forward.14} parent=0 // pred_region
    _
  $region9: #{opt_regressor_forward.14} parent=0 // pred_fallthru
    _
  // Predicated region
  $region10: #{opt_regressor_forward.14} parent=0 // pred_check
    _
  $region11: #{opt_regressor_forward.14} parent=0 // pred_check_branch
    %14 = sbr.rel (0) target = $region13
  $region12: #{opt_regressor_forward.14} parent=0 // pred_region
    _
  $region13: #{opt_regressor_forward.14} parent=0 // pred_fallthru
    _
  // Predicated region
  $region14: #{opt_regressor_forward.14} parent=0 // pred_check
    _
  $region15: #{opt_regressor_forward.14} parent=0 // pred_check_branch
    %16 = sbr.rel (0) target = $region17
  $region16: #{opt_regressor_forward.14} parent=0 // pred_region
    _
  $region17: #{opt_regressor_forward.14} parent=0 // pred_fallthru
    _
  %p18 = scmp.eq.s32.totalorder 0, 0
  // Predicated region
  $region18: #{opt_regressor_forward.14} parent=0 // pred_check
    %p19 = pneg %p18
  $region19: #{opt_regressor_forward.14} parent=0 // pred_check_branch
    %21 = sbr.rel (%p19) target = $region21
  $region20: #{opt_regressor_forward.14} parent=0 // pred_region
    %vm22 = vcmask 261120
    %23 = vst.msk [vmem:[#allocation2] sm:$0xff] %vm22, 0.0
    %24 = vst.msk [vmem:[#allocation2 + $0x8] sm:$0xff] %vm22, 0.0
  $region21: #{opt_regressor_forward.14} parent=0 // pred_fallthru
    _
  %v25 = vld [vmem:[#allocation2] sm:$0xff]
  %v26 = vld [vmem:[#allocation2 + $0x8] sm:$0xff]
  %v27 = vld [vmem:[%s0] sm:$0xf]
  %v28 = vld [vmem:[%s0 + $0x4] sm:$0xf]
  %v29 = vld [vmem:[%s1] sm:$0xf]
  %v30 = vld [vmem:[%s1 + $0x4] sm:$0xf]
  %v31 = vld [vmem:[%s1 + $0x8] sm:$0xf]
  %v32 = vld [vmem:[%s1 + $0xc] sm:$0xf]
  %v33 = vld [vmem:[%s1 + $0x10] sm:$0xf]
  %v34 = vld [vmem:[%s1 + $0x14] sm:$0xf]
  %v35 = vld [vmem:[%s1 + $0x18] sm:$0xf]
  %v36 = vld [vmem:[%s1 + $0x1c] sm:$0xf]
  %v39 = vunpack.c.l.b16 %v27
  %v40 = vunpack.c.l.b16 %v28
  %v41 = vpack.c.b16 %v40, %v39
  %v50 = vunpack.c.l.b16 %v29
  %v51 = vunpack.c.l.b16 %v30
  %v52 = vunpack.c.l.b16 %v31
  %v53 = vunpack.c.l.b16 %v32
  %v54 = vunpack.c.l.b16 %v33
  %v55 = vunpack.c.l.b16 %v34
  %v56 = vunpack.c.l.b16 %v35
  %v57 = vunpack.c.l.b16 %v36
  %v58 = vpack.c.b16 %v51, %v50
  %v59 = vpack.c.b16 %v53, %v52
  %v60 = vpack.c.b16 %v55, %v54
  %v61 = vpack.c.b16 %v57, %v56
  %vm66 = vcmask 523264
  %v68 = vsel %vm66, %v41, 0
  %70 = vmatprep.subr.bf16.mxu0 0
  %71 = vmatpush1.bf16.msra.mxu0 0
  %72 = vmatprep.subr.bf16.mxu0 0
  %73 = vmatpush1.bf16.msra.mxu0 0
  %74 = vmatprep.subr.bf16.mxu0 0
  %75 = vmatpush1.bf16.msra.mxu0 0
  %76 = vmatprep.subr.bf16.mxu0 0
  %77 = vmatpush1.bf16.msra.mxu0 0
  %78 = vmatprep.subr.bf16.mxu0 0
  %79 = vmatpush1.bf16.msra.mxu0 %v61
  %80 = vmatprep.subr.bf16.mxu0 0
  %81 = vmatpush1.bf16.msra.mxu0 %v60
  %82 = vmatprep.subr.bf16.mxu0 0
  %83 = vmatpush1.bf16.msra.mxu0 %v59
  %84 = vmatprep.subr.bf16.mxu0 0
  %85 = vmatpush1.bf16.msra.mxu0 %v58
  %86 = vmatprep.subr.bf16.mxu0 0
  %87 = vmatpush2.bf16.msra.mxu0 0
  %88 = vmatprep.subr.bf16.mxu0 0
  %89 = vmatpush2.bf16.msra.mxu0 0
  %90 = vmatprep.subr.bf16.mxu0 0
  %91 = vmatpush2.bf16.msra.mxu0 0
  %92 = vmatprep.subr.bf16.mxu0 0
  %93 = vmatpush2.bf16.msra.mxu0 0
  %94 = vmatprep.subr.bf16.mxu0 0
  %95 = vmatpush2.bf16.msra.mxu0 0
  %96 = vmatprep.subr.bf16.mxu0 0
  %97 = vmatpush2.bf16.msra.mxu0 0
  %98 = vmatprep.subr.bf16.mxu0 0
  %99 = vmatpush2.bf16.msra.mxu0 0
  %100 = vmatprep.subr.bf16.mxu0 0
  %101 = vmatpush2.bf16.msra.mxu0 0
  %102 = vmatprep.mubr.bf16.mxu0 0
  %103 = vmatmul.mubr.bf16.gmra.mxu0 %v68
  %v104 = vpop.f32.mrf.mxu0
  %v105 = vadd.f32 0.0, %v104
  %v106 = vpop.f32.mrf.mxu0
  %v107 = vpop.f32.mrf.mxu0
  %v108 = vadd.f32 0.0, %v107
  %v109 = vpop.f32.mrf.mxu0
  %110 = vdwg.mxu0
  %v111 = vadd.f32 %v25, %v105
  %v112 = vadd.f32 %v26, %v108
  %vm113 = vcmask 261120
  %114 = vst.msk [vmem:[#allocation2] sm:$0xff] %vm113, %v111
  %115 = vst.msk [vmem:[#allocation2 + $0x8] sm:$0xff] %vm113, %v112
  // Predicated region
  $region22: #{opt_regressor_forward.14} parent=0 // pred_check
    %p116 = pneg %p18
  $region23: #{opt_regressor_forward.14} parent=0 // pred_check_branch
    %118 = sbr.rel (%p116) target = $region25
  $region24: #{opt_regressor_forward.14} parent=0 // pred_region
    %v119 = vld [vmem:[#allocation2] sm:$0xff]
    %v120 = vld [vmem:[#allocation2 + $0x8] sm:$0xff]
    %v121 = vld [vmem:[%s2] sm:$0x1]
    %v123 = vlaneseq
    %v124 = vshrl.u32 %v123, 7
    %v125 = vsub.s32 0, %v124
    %v126 = vrot.slane %v121, %v125
    %v128 = vadd.f32 %v119, %v126
    %v129 = vadd.f32 %v120, %v126
    %v130 = vld [vmem:[%s3] sm:$0xf]
    %v131 = vld [vmem:[%s3 + $0x4] sm:$0xf]
    %v132 = vunpack.c.l.bf16 %v130
    %v133 = vunpack.c.l.bf16 %v131
    %v134 = vadd.f32 %v128, %v132
    %v135 = vadd.f32 %v129, %v133
    %v136 = vpack.c.bf16 %v135, %v134
    %v138 = vunpack.c.l.b16 %v136
    %v139 = vunpack.c.h.b16 %v136
    %v140 = vpack.c.b16 %v138, %v138
    %v141 = vpack.c.b16 %v139, %v139
    %vm144 = vcmask 257024
    %145 = vst.msk [vmem:[%s4] sm:$0xf] %vm144, %v140
    %146 = vst.msk [vmem:[%s4 + $0x4] sm:$0xf] %vm144, %v141
  $region25: #{opt_regressor_forward.14} parent=0 // pred_fallthru
    _
  // Predicated region
  $region26: #{opt_regressor_forward.14} parent=0 // pred_check
    _
  $region27: #{opt_regressor_forward.14} parent=0 // pred_check_branch
    %148 = sbr.rel (0) target = $region29
  $region28: #{opt_regressor_forward.14} parent=0 // pred_region
    _
  $region29: #{opt_regressor_forward.14} parent=0 // pred_fallthru
    _
  // Predicated region
  $region30: #{opt_regressor_forward.14} parent=0 // pred_check
    _
  $region31: #{opt_regressor_forward.14} parent=0 // pred_check_branch
    %150 = sbr.rel (0) target = $region33
  $region32: #{opt_regressor_forward.14} parent=0 // pred_region
    _
  $region33: #{opt_regressor_forward.14} parent=0 // pred_fallthru
    _

</llo_original>
